<compile_context>
chip_gen: v5e
topology: v5e:2x2
jax: 0.10.0
libtpu: 0.0.40
codegen_flags: <defaults>
</compile_context>

<pallas_src>
import jax
import jax.numpy as jnp
from jax import lax
from jax.experimental import pallas as pl
from jax.experimental.pallas import tpu as pltpu


# ----------------------------------------------------------------------------
# Fused kernel (single grid step, everything batched over M samples):
#   pi[m,k,l,j]   = alpha[m,k,l] * base[l,j]                    (never hits HBM)
#   t1[m,l,n]     = sum_{k,j} pi[m,k,l,j] * x[n,k,j]            (one 128-wide MXU matmul)
#   lse[m,l,k]    = logsumexp_j pi[m,k,l,j]                     (batched, J in lanes)
#   t2[m,l,n]     = sum_k lse[m,l,k] * (sum_j x[n,k,j])         (tiny MXU matmul)
#   out[m,l,n]    = log_softmax_l( t1 - t2 + log_p[l] )
# ----------------------------------------------------------------------------
def _fused_forward_kernel(xf_ref, xs_ref, aexp_ref, a4_ref, bt_ref, b4_ref, lp_ref, out_ref):
    """
    xf_ref:   [N, K*J]      x flattened over (k, j), c = k*J + j
    xs_ref:   [N, K]        sum_j x[n, k, j]
    aexp_ref: [M, L, K*J]   alpha[m,k,l] repeated J times along c (lane-dense)
    a4_ref:   [M, L, K, 1]  alpha[m,k,l]
    bt_ref:   [1, L, K*J]   base[l,j] tiled K times along c
    b4_ref:   [1, L, 1, J]  base[l,j]
    lp_ref:   [1, L, 1]     log_softmax(log_p)  (hoisted to the wrapper)
    out_ref:  [M, L, N]     log posterior (wrapper transposes to [M, N, L])
    """
    x_flat = xf_ref[...]                    # [N, C]
    xsum = xs_ref[...]                      # [N, K]
    a_exp = aexp_ref[...]                   # [M, L, C]
    a4 = a4_ref[...]                        # [M, L, K, 1]
    b_tile = bt_ref[...]                    # [1, L, C]
    b4 = b4_ref[...]                        # [1, L, 1, J]
    lp = lp_ref[...]                        # [1, L, 1]

    m_, l_, c_ = a_exp.shape
    n_ = x_flat.shape[0]
    k_ = a4.shape[2]

    # ---- term 1: one MXU matmul over the full c = K*J (=128) contraction, all m at once.
    pi_flat = (a_exp * b_tile).reshape(m_ * l_, c_)                       # [M*L, C]
    t1 = lax.dot_general(pi_flat, x_flat, (((1,), (1,)), ((), ())),
                         preferred_element_type=jnp.float32)              # [M*L, N]

    # ---- per-(m,l,k) logsumexp over j, batched (J stays in the lane dim).
    pi4 = a4 * b4                                                         # [M, L, K, J]
    mx = jnp.max(pi4, axis=-1, keepdims=True)                             # [M, L, K, 1]
    ssum = jnp.sum(jnp.exp(pi4 - mx), axis=-1)                            # [M, L, K]
    # second max (no keepdims) keeps K in lanes and avoids a squeeze/relayout; it's tiny.
    lse = jnp.log(ssum) + jnp.max(pi4, axis=-1)                           # [M, L, K]

    # ---- term 2: fold the softmax normaliser back in: sum_k xsum[n,k] * lse[m,l,k]
    t2 = lax.dot_general(lse.reshape(m_ * l_, k_), xsum, (((1,), (1,)), ((), ())),
                         preferred_element_type=jnp.float32)              # [M*L, N]

    logits = (t1 - t2).reshape(m_, l_, n_) + lp                           # [M, L, N]

    # ---- final log_softmax over leaves (axis 1 = sublane dim), batched over m and n.
    mx2 = jnp.max(logits, axis=1, keepdims=True)                          # [M, 1, N]
    lse2 = jnp.log(jnp.sum(jnp.exp(logits - mx2), axis=1, keepdims=True)) + mx2
    out_ref[...] = logits - lse2


@jax.jit
def fused_log_posterior(x, base, alpha, log_p):
    """x: [N,K,J], base: [L,J], alpha: [M,K,L], log_p: [1,L]  ->  [M,N,L] log posterior."""
    N, K, J = x.shape
    M, _, L = alpha.shape
    C = K * J
    f32 = jnp.float32

    # Layout prep (tiny XLA ops, done once per call).
    x = x.astype(f32)
    x_flat = x.reshape(N, C)                                     # [N, K*J]  c = k*J + j
    xsum = jnp.sum(x, axis=2)                                    # [N, K]
    alpha_mlk = jnp.transpose(alpha.astype(f32), (0, 2, 1))      # [M, L, K]
    alpha_exp = jnp.repeat(alpha_mlk, J, axis=-1)                # [M, L, K*J]
    alpha_4d = alpha_mlk[..., None]                              # [M, L, K, 1]
    base = base.astype(f32)
    base_tiled = jnp.tile(base, (1, K))[None]                    # [1, L, K*J]
    base_4d = base[None, :, None, :]                             # [1, L, 1, J]
    logp_n = jax.nn.log_softmax(log_p.astype(f32), axis=-1).reshape(1, L, 1)

    out_mln = pl.pallas_call(
        _fused_forward_kernel,
        out_shape=jax.ShapeDtypeStruct((M, L, N), f32),
        grid_spec=pltpu.PrefetchScalarGridSpec(
            num_scalar_prefetch=0,
            grid=(1,),                      # single step: whole problem fits VMEM easily
            in_specs=[
                pl.BlockSpec((N, C), lambda i: (0, 0)),
                pl.BlockSpec((N, K), lambda i: (0, 0)),
                pl.BlockSpec((M, L, C), lambda i: (0, 0, 0)),
                pl.BlockSpec((M, L, K, 1), lambda i: (0, 0, 0, 0)),
                pl.BlockSpec((1, L, C), lambda i: (0, 0, 0)),
                pl.BlockSpec((1, L, 1, J), lambda i: (0, 0, 0, 0)),
                pl.BlockSpec((1, L, 1), lambda i: (0, 0, 0)),
            ],
            out_specs=pl.BlockSpec((M, L, N), lambda i: (0, 0, 0)),
        ),
        compiler_params=pltpu.CompilerParams(
            dimension_semantics=("arbitrary",)),
    )(x_flat, xsum, alpha_exp, alpha_4d, base_tiled, base_4d, logp_n)

    # 2 KB transpose back to the module's [M, N, L] layout, done in XLA (free).
    return jnp.transpose(out_mln, (0, 2, 1))


# ----------------------------------------------------------------------------
# Model wrapper (parameter setup is plain-JAX glue)
# ----------------------------------------------------------------------------
class PallasModel:
    def __init__(self, key, *, L, J, zoom=0.4, temperature=1.0):
        self.L, self.J = L, J
        self.zoom = jnp.float32(zoom)
        self.temperature = jnp.float32(temperature)
        # self.p parameter: log of uniform prior over leaves, shape [1, L]
        self.p = jnp.log(jnp.ones((1, L), jnp.float32) / L)
        # Deterministic synthetic tree distance matrix [L, J] (integer path distances >= 0)
        self.distance_matrix = jax.random.randint(
            key, (L, J), minval=0, maxval=7).astype(jnp.float32)
        # Precompute base[l, j] = -(D + 1e-8)**zoom * temperature  (get_log_pi glue)
        self.base = (-jnp.power(self.distance_matrix + 1e-8, self.zoom)
                     * self.temperature).astype(jnp.float32)

    def forward(self, x, log_p, alpha):
        """x: [N, K, J], log_p: [1, L], alpha: [M, K, L] -> log-posterior [M, N, L]."""
        return fused_log_posterior(x, self.base, alpha, log_p)


# ----------------------------------------------------------------------------
# Pure-JAX reference for correctness
# ----------------------------------------------------------------------------
def reference_forward(base, x, log_p, alpha):
    logits_pi = jnp.einsum('lj,mkl->mklj', base, alpha)
    log_pi = jax.nn.log_softmax(logits_pi, axis=3)
    lp = jax.nn.log_softmax(log_p, axis=1)[0]
    logits = jnp.einsum('nkj,mklj->mnl', x, log_pi,
                        precision=lax.Precision.HIGHEST) + lp
    return jax.nn.log_softmax(logits, axis=2)


if __name__ == "__main__":
    key = jax.random.PRNGKey(0)
    k_tree, k_x, k_logp, k_alpha = jax.random.split(key, 4)

    # Small shapes implied by the module:
    #   N questions, K workers, J tree nodes, L leaves, M Monte-Carlo samples
    N, K, J, L, M = 8, 4, 32, 16, 4

    model = PallasModel(k_tree, L=L, J=J)

    x = jax.random.normal(k_x, (N, K, J), dtype=jnp.float32)
    log_p = jax.random.normal(k_logp, (1, L), dtype=jnp.float32)
    # alpha is a softplus output in the original code -> positive
    alpha = jax.nn.softplus(jax.random.normal(k_alpha, (M, K, L), dtype=jnp.float32))

    out = jax.block_until_ready(model.forward(x, log_p, alpha))
    ref = jax.block_until_ready(reference_forward(model.base, x, log_p, alpha))

    assert out.shape == (M, N, L), out.shape
    # f32 end-to-end; 1e-3 abs on log-probs comfortably covers MXU f32-accumulation noise
    # while still catching any real indexing/layout bug (which would be O(1)).
    err = float(jnp.max(jnp.abs(out - ref)))
    if err > 1e-3:
        raise AssertionError(f"mismatch vs reference: max abs err {err}")
    print("KERNEL_OK")
</pallas_src>

<mosaic_0001>
module attributes {stable_mosaic.version = 11 : i64} {
  func.func @_fused_forward_kernel(%arg0: i32, %arg1: memref<8x128xf32, #tpu.memory_space<vmem>>, %arg2: memref<8x4xf32, #tpu.memory_space<vmem>>, %arg3: memref<4x16x128xf32, #tpu.memory_space<vmem>>, %arg4: memref<4x16x4x1xf32, #tpu.memory_space<vmem>>, %arg5: memref<1x16x128xf32, #tpu.memory_space<vmem>>, %arg6: memref<1x16x1x32xf32, #tpu.memory_space<vmem>>, %arg7: memref<1x16x1xf32, #tpu.memory_space<vmem>>, %arg8: memref<4x16x8xf32, #tpu.memory_space<vmem>>) attributes {dimension_semantics = [#tpu.dimension_semantics<arbitrary>], iteration_bounds = array<i64: 1>, scalar_prefetch = 0 : i64, scratch_operands = 0 : i64, tpu.core_type = #tpu.core_type<tc>, window_params = [{pipeline_mode = #tpu.pipeline_mode<synchronous>, transform_indices = @transform_0, window_bounds = array<i64: 8, 128>}, {pipeline_mode = #tpu.pipeline_mode<synchronous>, transform_indices = @transform_1, window_bounds = array<i64: 8, 4>}, {pipeline_mode = #tpu.pipeline_mode<synchronous>, transform_indices = @transform_2, window_bounds = array<i64: 4, 16, 128>}, {pipeline_mode = #tpu.pipeline_mode<synchronous>, transform_indices = @transform_3, window_bounds = array<i64: 4, 16, 4, 1>}, {pipeline_mode = #tpu.pipeline_mode<synchronous>, transform_indices = @transform_4, window_bounds = array<i64: 1, 16, 128>}, {pipeline_mode = #tpu.pipeline_mode<synchronous>, transform_indices = @transform_5, window_bounds = array<i64: 1, 16, 1, 32>}, {pipeline_mode = #tpu.pipeline_mode<synchronous>, transform_indices = @transform_6, window_bounds = array<i64: 1, 16, 1>}, {pipeline_mode = #tpu.pipeline_mode<synchronous>, transform_indices = @transform_7, window_bounds = array<i64: 4, 16, 8>}]} {
    %c0 = arith.constant 0 : index
    %c0_0 = arith.constant 0 : index
    %0 = vector.load %arg1[%c0, %c0_0] : memref<8x128xf32, #tpu.memory_space<vmem>>, vector<8x128xf32>
    %c0_1 = arith.constant 0 : index
    %c0_2 = arith.constant 0 : index
    %1 = vector.load %arg2[%c0_1, %c0_2] : memref<8x4xf32, #tpu.memory_space<vmem>>, vector<8x4xf32>
    %c0_3 = arith.constant 0 : index
    %c0_4 = arith.constant 0 : index
    %c0_5 = arith.constant 0 : index
    %2 = vector.load %arg3[%c0_3, %c0_4, %c0_5] : memref<4x16x128xf32, #tpu.memory_space<vmem>>, vector<4x16x128xf32>
    %c0_6 = arith.constant 0 : index
    %c0_7 = arith.constant 0 : index
    %c0_8 = arith.constant 0 : index
    %c0_9 = arith.constant 0 : index
    %3 = vector.load %arg4[%c0_6, %c0_7, %c0_8, %c0_9] : memref<4x16x4x1xf32, #tpu.memory_space<vmem>>, vector<4x16x4x1xf32>
    %c0_10 = arith.constant 0 : index
    %c0_11 = arith.constant 0 : index
    %c0_12 = arith.constant 0 : index
    %4 = vector.load %arg5[%c0_10, %c0_11, %c0_12] : memref<1x16x128xf32, #tpu.memory_space<vmem>>, vector<1x16x128xf32>
    %c0_13 = arith.constant 0 : index
    %c0_14 = arith.constant 0 : index
    %c0_15 = arith.constant 0 : index
    %c0_16 = arith.constant 0 : index
    %5 = vector.load %arg6[%c0_13, %c0_14, %c0_15, %c0_16] : memref<1x16x1x32xf32, #tpu.memory_space<vmem>>, vector<1x16x1x32xf32>
    %c0_17 = arith.constant 0 : index
    %c0_18 = arith.constant 0 : index
    %c0_19 = arith.constant 0 : index
    %6 = vector.load %arg7[%c0_17, %c0_18, %c0_19] : memref<1x16x1xf32, #tpu.memory_space<vmem>>, vector<1x16x1xf32>
    %7 = vector.broadcast %4 : vector<1x16x128xf32> to vector<4x16x128xf32>
    %8 = arith.mulf %2, %7 : vector<4x16x128xf32>
    %9 = vector.shape_cast %8 : vector<4x16x128xf32> to vector<64x128xf32>
    %cst = arith.constant dense<0.000000e+00> : vector<64x8xf32>
    %10 = tpu.matmul %9, %0, %cst {dimension_numbers = #tpu.dot_dimension_numbers<[1], [1], [0], [0], [0, 0, 1, 0], [], []>} : vector<64x128xf32>, vector<8x128xf32>, vector<64x8xf32> -> vector<64x8xf32>
    %11 = vector.broadcast %3 : vector<4x16x4x1xf32> to vector<4x16x4x32xf32>
    %12 = vector.broadcast %5 : vector<1x16x1x32xf32> to vector<4x16x4x32xf32>
    %13 = arith.mulf %11, %12 : vector<4x16x4x32xf32>
    %cst_20 = arith.constant dense<0xFF800000> : vector<4x16x4xf32>
    %14 = vector.multi_reduction <maximumf>, %13, %cst_20 [3] : vector<4x16x4x32xf32> to vector<4x16x4xf32>
    %15 = vector.shape_cast %14 : vector<4x16x4xf32> to vector<4x16x4x1xf32>
    %16 = vector.broadcast %15 : vector<4x16x4x1xf32> to vector<4x16x4x32xf32>
    %17 = arith.subf %13, %16 : vector<4x16x4x32xf32>
    %18 = math.exp %17 : vector<4x16x4x32xf32>
    %cst_21 = arith.constant dense<0.000000e+00> : vector<4x16x4xf32>
    %19 = vector.multi_reduction <add>, %18, %cst_21 [3] : vector<4x16x4x32xf32> to vector<4x16x4xf32>
    %20 = math.log %19 : vector<4x16x4xf32>
    %cst_22 = arith.constant dense<0xFF800000> : vector<4x16x4xf32>
    %21 = vector.multi_reduction <maximumf>, %13, %cst_22 [3] : vector<4x16x4x32xf32> to vector<4x16x4xf32>
    %22 = arith.addf %20, %21 : vector<4x16x4xf32>
    %23 = vector.shape_cast %22 : vector<4x16x4xf32> to vector<64x4xf32>
    %cst_23 = arith.constant dense<0.000000e+00> : vector<64x8xf32>
    %24 = tpu.matmul %23, %1, %cst_23 {dimension_numbers = #tpu.dot_dimension_numbers<[1], [1], [0], [0], [0, 0, 1, 0], [], []>} : vector<64x4xf32>, vector<8x4xf32>, vector<64x8xf32> -> vector<64x8xf32>
    %25 = arith.subf %10, %24 : vector<64x8xf32>
    %26 = vector.shape_cast %25 : vector<64x8xf32> to vector<4x16x8xf32>
    %27 = vector.broadcast %6 : vector<1x16x1xf32> to vector<4x16x8xf32>
    %28 = arith.addf %26, %27 : vector<4x16x8xf32>
    %cst_24 = arith.constant dense<0xFF800000> : vector<4x8xf32>
    %29 = vector.multi_reduction <maximumf>, %28, %cst_24 [1] : vector<4x16x8xf32> to vector<4x8xf32>
    %30 = vector.shape_cast %29 : vector<4x8xf32> to vector<4x1x8xf32>
    %31 = vector.broadcast %30 : vector<4x1x8xf32> to vector<4x16x8xf32>
    %32 = arith.subf %28, %31 : vector<4x16x8xf32>
    %33 = math.exp %32 : vector<4x16x8xf32>
    %cst_25 = arith.constant dense<0.000000e+00> : vector<4x8xf32>
    %34 = vector.multi_reduction <add>, %33, %cst_25 [1] : vector<4x16x8xf32> to vector<4x8xf32>
    %35 = vector.shape_cast %34 : vector<4x8xf32> to vector<4x1x8xf32>
    %36 = math.log %35 : vector<4x1x8xf32>
    %37 = arith.addf %36, %30 : vector<4x1x8xf32>
    %38 = vector.broadcast %37 : vector<4x1x8xf32> to vector<4x16x8xf32>
    %39 = arith.subf %28, %38 : vector<4x16x8xf32>
    %c0_26 = arith.constant 0 : index
    %c0_27 = arith.constant 0 : index
    %c0_28 = arith.constant 0 : index
    %40 = vector.load %arg8[%c0_26, %c0_27, %c0_28] : memref<4x16x8xf32, #tpu.memory_space<vmem>>, vector<4x16x8xf32>
    tpu.vector_store %arg8[%c0_26, %c0_27, %c0_28], %39 {strides = array<i32>} : memref<4x16x8xf32, #tpu.memory_space<vmem>>, vector<4x16x8xf32>,
    return
  }
  func.func @transform_0(%arg0: i32) -> (i32, i32) {
    %c0_i32 = arith.constant 0 : i32
    %c0_i32_0 = arith.constant 0 : i32
    %c0_i32_1 = arith.constant 0 : i32
    return %c0_i32, %c0_i32_0 : i32, i32
  }
  func.func @transform_1(%arg0: i32) -> (i32, i32) {
    %c0_i32 = arith.constant 0 : i32
    %c0_i32_0 = arith.constant 0 : i32
    %c0_i32_1 = arith.constant 0 : i32
    return %c0_i32, %c0_i32_0 : i32, i32
  }
  func.func @transform_2(%arg0: i32) -> (i32, i32, i32) {
    %c0_i32 = arith.constant 0 : i32
    %c0_i32_0 = arith.constant 0 : i32
    %c0_i32_1 = arith.constant 0 : i32
    %c0_i32_2 = arith.constant 0 : i32
    return %c0_i32, %c0_i32_0, %c0_i32_1 : i32, i32, i32
  }
  func.func @transform_3(%arg0: i32) -> (i32, i32, i32, i32) {
    %c0_i32 = arith.constant 0 : i32
    %c0_i32_0 = arith.constant 0 : i32
    %c0_i32_1 = arith.constant 0 : i32
    %c0_i32_2 = arith.constant 0 : i32
    %c0_i32_3 = arith.constant 0 : i32
    return %c0_i32, %c0_i32_0, %c0_i32_1, %c0_i32_2 : i32, i32, i32, i32
  }
  func.func @transform_4(%arg0: i32) -> (i32, i32, i32) {
    %c0_i32 = arith.constant 0 : i32
    %c0_i32_0 = arith.constant 0 : i32
    %c0_i32_1 = arith.constant 0 : i32
    %c0_i32_2 = arith.constant 0 : i32
    return %c0_i32, %c0_i32_0, %c0_i32_1 : i32, i32, i32
  }
  func.func @transform_5(%arg0: i32) -> (i32, i32, i32, i32) {
    %c0_i32 = arith.constant 0 : i32
    %c0_i32_0 = arith.constant 0 : i32
    %c0_i32_1 = arith.constant 0 : i32
    %c0_i32_2 = arith.constant 0 : i32
    %c0_i32_3 = arith.constant 0 : i32
    return %c0_i32, %c0_i32_0, %c0_i32_1, %c0_i32_2 : i32, i32, i32, i32
  }
  func.func @transform_6(%arg0: i32) -> (i32, i32, i32) {
    %c0_i32 = arith.constant 0 : i32
    %c0_i32_0 = arith.constant 0 : i32
    %c0_i32_1 = arith.constant 0 : i32
    %c0_i32_2 = arith.constant 0 : i32
    return %c0_i32, %c0_i32_0, %c0_i32_1 : i32, i32, i32
  }
  func.func @transform_7(%arg0: i32) -> (i32, i32, i32) {
    %c0_i32 = arith.constant 0 : i32
    %c0_i32_0 = arith.constant 0 : i32
    %c0_i32_1 = arith.constant 0 : i32
    %c0_i32_2 = arith.constant 0 : i32
    return %c0_i32, %c0_i32_0, %c0_i32_1 : i32, i32, i32
  }
}

</mosaic_0001>

<llo_original>
// kernel: fused_log_posterior.1
$region0: #{fused_log_posterior.1}
  #allocation0 [shape = 'u32[]', space=smem, size = 0x4, offset = 0x4, fixed_abs, tag = 'smem constant byte address 0x4 - core index']
  #allocation1 [shape = 'u32[72,128]{1,0:T(1,128)}', space=vmem, size = 0x9000, scoped, tag = 'internal scratch']
  %s0 = inlined_call_operand.vmem [shape: f32[8,128], index: 0, kind: input, shape index: {}]
  %s1 = inlined_call_operand.vmem [shape: f32[8,4], index: 1, kind: input, shape index: {}]
  %s2 = inlined_call_operand.vmem [shape: f32[4,16,128], index: 2, kind: input, shape index: {}]
  %s3 = inlined_call_operand.vmem [shape: f32[4,16,4,1], index: 3, kind: input, shape index: {}]
  %s4 = inlined_call_operand.vmem [shape: f32[1,16,128], index: 4, kind: input, shape index: {}]
  %s5 = inlined_call_operand.vmem [shape: f32[1,16,1,32], index: 5, kind: input, shape index: {}]
  %s6 = inlined_call_operand.vmem [shape: f32[1,16,1], index: 6, kind: input, shape index: {}]
  %s7 = inlined_call_operand.vmem [shape: f32[4,16,8], index: 7, kind: output, shape index: {}]
  %s8 = sld [smem:[#allocation0]]
  $region38: #{fused_log_posterior.1} parent=0
    _
  %s10 = ssub.s32 1, %s8
  %s11 = scalar_select 0, %s10, %s8
  // Predicated region
  $region2: #{fused_log_posterior.1} parent=0 // pred_check
    _
  $region3: #{fused_log_posterior.1} parent=0 // pred_check_branch
    %13 = sbr.rel (0) target = $region5
  $region4: #{fused_log_posterior.1} parent=0 // pred_region
    _
  $region5: #{fused_log_posterior.1} parent=0 // pred_fallthru
    _
  // Predicated region
  $region6: #{fused_log_posterior.1} parent=0 // pred_check
    _
  $region7: #{fused_log_posterior.1} parent=0 // pred_check_branch
    %15 = sbr.rel (0) target = $region9
  $region8: #{fused_log_posterior.1} parent=0 // pred_region
    _
  $region9: #{fused_log_posterior.1} parent=0 // pred_fallthru
    _
  // Predicated region
  $region10: #{fused_log_posterior.1} parent=0 // pred_check
    _
  $region11: #{fused_log_posterior.1} parent=0 // pred_check_branch
    %17 = sbr.rel (0) target = $region13
  $region12: #{fused_log_posterior.1} parent=0 // pred_region
    _
  $region13: #{fused_log_posterior.1} parent=0 // pred_fallthru
    _
  // Predicated region
  $region14: #{fused_log_posterior.1} parent=0 // pred_check
    _
  $region15: #{fused_log_posterior.1} parent=0 // pred_check_branch
    %19 = sbr.rel (0) target = $region17
  $region16: #{fused_log_posterior.1} parent=0 // pred_region
    _
  $region17: #{fused_log_posterior.1} parent=0 // pred_fallthru
    _
  // Predicated region
  $region18: #{fused_log_posterior.1} parent=0 // pred_check
    _
  $region19: #{fused_log_posterior.1} parent=0 // pred_check_branch
    %21 = sbr.rel (0) target = $region21
  $region20: #{fused_log_posterior.1} parent=0 // pred_region
    _
  $region21: #{fused_log_posterior.1} parent=0 // pred_fallthru
    _
  // Predicated region
  $region22: #{fused_log_posterior.1} parent=0 // pred_check
    _
  $region23: #{fused_log_posterior.1} parent=0 // pred_check_branch
    %23 = sbr.rel (0) target = $region25
  $region24: #{fused_log_posterior.1} parent=0 // pred_region
    _
  $region25: #{fused_log_posterior.1} parent=0 // pred_fallthru
    _
  // Predicated region
  $region26: #{fused_log_posterior.1} parent=0 // pred_check
    _
  $region27: #{fused_log_posterior.1} parent=0 // pred_check_branch
    %25 = sbr.rel (0) target = $region29
  $region28: #{fused_log_posterior.1} parent=0 // pred_region
    _
  $region29: #{fused_log_posterior.1} parent=0 // pred_fallthru
    _
  %v26 = vld [vmem:[%s0] sm:$0xff]
  %v27 = vld [vmem:[%s1] sm:$0xff]
  %v28 = vld [vmem:[%s2] sm:$0xff]
  %v29 = vld [vmem:[%s2 + $0x8] sm:$0xff]
  %v30 = vld [vmem:[%s2 + $0x10] sm:$0xff]
  %v31 = vld [vmem:[%s2 + $0x18] sm:$0xff]
  %v32 = vld [vmem:[%s2 + $0x20] sm:$0xff]
  %v33 = vld [vmem:[%s2 + $0x28] sm:$0xff]
  %v34 = vld [vmem:[%s2 + $0x30] sm:$0xff]
  %v35 = vld [vmem:[%s2 + $0x38] sm:$0xff]
  %v36 = vld [vmem:[%s3] sm:$0xf]
  %v37 = vld [vmem:[%s3 + $0x4] sm:$0xf]
  %v38 = vld [vmem:[%s3 + $0x8] sm:$0xf]
  %v39 = vld [vmem:[%s3 + $0xc] sm:$0xf]
  %v40 = vld [vmem:[%s3 + $0x10] sm:$0xf]
  %v41 = vld [vmem:[%s3 + $0x14] sm:$0xf]
  %v42 = vld [vmem:[%s3 + $0x18] sm:$0xf]
  %v43 = vld [vmem:[%s3 + $0x1c] sm:$0xf]
  %v44 = vld [vmem:[%s3 + $0x20] sm:$0xf]
  %v45 = vld [vmem:[%s3 + $0x24] sm:$0xf]
  %v46 = vld [vmem:[%s3 + $0x28] sm:$0xf]
  %v47 = vld [vmem:[%s3 + $0x2c] sm:$0xf]
  %v48 = vld [vmem:[%s3 + $0x30] sm:$0xf]
  %v49 = vld [vmem:[%s3 + $0x34] sm:$0xf]
  %v50 = vld [vmem:[%s3 + $0x38] sm:$0xf]
  %v51 = vld [vmem:[%s3 + $0x3c] sm:$0xf]
  %v52 = vld [vmem:[%s3 + $0x40] sm:$0xf]
  %v53 = vld [vmem:[%s3 + $0x44] sm:$0xf]
  %v54 = vld [vmem:[%s3 + $0x48] sm:$0xf]
  %v55 = vld [vmem:[%s3 + $0x4c] sm:$0xf]
  %v56 = vld [vmem:[%s3 + $0x50] sm:$0xf]
  %v57 = vld [vmem:[%s3 + $0x54] sm:$0xf]
  %v58 = vld [vmem:[%s3 + $0x58] sm:$0xf]
  %v59 = vld [vmem:[%s3 + $0x5c] sm:$0xf]
  %v60 = vld [vmem:[%s3 + $0x60] sm:$0xf]
  %v61 = vld [vmem:[%s3 + $0x64] sm:$0xf]
  %v62 = vld [vmem:[%s3 + $0x68] sm:$0xf]
  %v63 = vld [vmem:[%s3 + $0x6c] sm:$0xf]
  %v64 = vld [vmem:[%s3 + $0x70] sm:$0xf]
  %v65 = vld [vmem:[%s3 + $0x74] sm:$0xf]
  %v66 = vld [vmem:[%s3 + $0x78] sm:$0xf]
  %v67 = vld [vmem:[%s3 + $0x7c] sm:$0xf]
  %v68 = vld [vmem:[%s3 + $0x80] sm:$0xf]
  %v69 = vld [vmem:[%s3 + $0x84] sm:$0xf]
  %v70 = vld [vmem:[%s3 + $0x88] sm:$0xf]
  %v71 = vld [vmem:[%s3 + $0x8c] sm:$0xf]
  %v72 = vld [vmem:[%s3 + $0x90] sm:$0xf]
  %v73 = vld [vmem:[%s3 + $0x94] sm:$0xf]
  %v74 = vld [vmem:[%s3 + $0x98] sm:$0xf]
  %v75 = vld [vmem:[%s3 + $0x9c] sm:$0xf]
  %v76 = vld [vmem:[%s3 + $0xa0] sm:$0xf]
  %v77 = vld [vmem:[%s3 + $0xa4] sm:$0xf]
  %v78 = vld [vmem:[%s3 + $0xa8] sm:$0xf]
  %v79 = vld [vmem:[%s3 + $0xac] sm:$0xf]
  %v80 = vld [vmem:[%s3 + $0xb0] sm:$0xf]
  %v81 = vld [vmem:[%s3 + $0xb4] sm:$0xf]
  %v82 = vld [vmem:[%s3 + $0xb8] sm:$0xf]
  %v83 = vld [vmem:[%s3 + $0xbc] sm:$0xf]
  %v84 = vld [vmem:[%s3 + $0xc0] sm:$0xf]
  %v85 = vld [vmem:[%s3 + $0xc4] sm:$0xf]
  %v86 = vld [vmem:[%s3 + $0xc8] sm:$0xf]
  %v87 = vld [vmem:[%s3 + $0xcc] sm:$0xf]
  %v88 = vld [vmem:[%s3 + $0xd0] sm:$0xf]
  %v89 = vld [vmem:[%s3 + $0xd4] sm:$0xf]
  %v90 = vld [vmem:[%s3 + $0xd8] sm:$0xf]
  %v91 = vld [vmem:[%s3 + $0xdc] sm:$0xf]
  %v92 = vld [vmem:[%s3 + $0xe0] sm:$0xf]
  %v93 = vld [vmem:[%s3 + $0xe4] sm:$0xf]
  %v94 = vld [vmem:[%s3 + $0xe8] sm:$0xf]
  %v95 = vld [vmem:[%s3 + $0xec] sm:$0xf]
  %v96 = vld [vmem:[%s3 + $0xf0] sm:$0xf]
  %v97 = vld [vmem:[%s3 + $0xf4] sm:$0xf]
  %v98 = vld [vmem:[%s3 + $0xf8] sm:$0xf]
  %v99 = vld [vmem:[%s3 + $0xfc] sm:$0xf]
  %v100 = vld [vmem:[%s4] sm:$0xff]
  %v101 = vld [vmem:[%s4 + $0x8] sm:$0xff]
  %v102 = vld [vmem:[%s5] sm:$0x1]
  %v103 = vld [vmem:[%s5 + $0x1] sm:$0x1]
  %v104 = vld [vmem:[%s5 + $0x2] sm:$0x1]
  %v105 = vld [vmem:[%s5 + $0x3] sm:$0x1]
  %v106 = vld [vmem:[%s5 + $0x4] sm:$0x1]
  %v107 = vld [vmem:[%s5 + $0x5] sm:$0x1]
  %v108 = vld [vmem:[%s5 + $0x6] sm:$0x1]
  %v109 = vld [vmem:[%s5 + $0x7] sm:$0x1]
  %v110 = vld [vmem:[%s5 + $0x8] sm:$0x1]
  %v111 = vld [vmem:[%s5 + $0x9] sm:$0x1]
  %v112 = vld [vmem:[%s5 + $0xa] sm:$0x1]
  %v113 = vld [vmem:[%s5 + $0xb] sm:$0x1]
  %v114 = vld [vmem:[%s5 + $0xc] sm:$0x1]
  %v115 = vld [vmem:[%s5 + $0xd] sm:$0x1]
  %v116 = vld [vmem:[%s5 + $0xe] sm:$0x1]
  %v117 = vld [vmem:[%s5 + $0xf] sm:$0x1]
  %v118 = vld [vmem:[%s6] sm:$0xff]
  %v119 = vld [vmem:[%s6 + $0x8] sm:$0xff]
  %v120 = vmul.f32 %v28, %v100
  %v121 = vmul.f32 %v29, %v101
  %v122 = vmul.f32 %v30, %v100
  %v123 = vmul.f32 %v31, %v101
  %v124 = vmul.f32 %v32, %v100
  %v125 = vmul.f32 %v33, %v101
  %v126 = vmul.f32 %v34, %v100
  %v127 = vmul.f32 %v35, %v101
  %128 = vmatpush.xpose.msra.mxu0 0.0
  %129 = vmatpush.xpose.msra.mxu0 0.0
  %130 = vmatpush.xpose.msra.mxu0 0.0
  %131 = vmatpush.xpose.msra.mxu0 0.0
  %132 = vmatpush.xpose.msra.mxu0 0.0
  %133 = vmatpush.xpose.msra.mxu0 0.0
  %134 = vmatpush.xpose.msra.mxu0 0.0
  %135 = vmatpush.xpose.msra.mxu0 0.0
  %136 = vmatpush.xpose.msra.mxu0 0.0
  %137 = vmatpush.xpose.msra.mxu0 0.0
  %138 = vmatpush.xpose.msra.mxu0 0.0
  %139 = vmatpush.xpose.msra.mxu0 0.0
  %140 = vmatpush.xpose.msra.mxu0 0.0
  %141 = vmatpush.xpose.msra.mxu0 0.0
  %142 = vmatpush.xpose.msra.mxu0 0.0
  %143 = vmatpush.xpose.msra.mxu0 %v26
  %144 = vmatmul.f32.gmra.mxu0 %v120
  %v145 = vpop.f32.mrf.mxu0
  %v146 = vadd.f32 0.0, %v145
  %147 = vmatmul.f32.gmra.mxu0 %v121
  %v148 = vpop.f32.mrf.mxu0
  %v149 = vadd.f32 0.0, %v148
  %150 = vmatmul.f32.gmra.mxu0 %v122
  %v151 = vpop.f32.mrf.mxu0
  %v152 = vadd.f32 0.0, %v151
  %153 = vmatmul.f32.gmra.mxu0 %v123
  %v154 = vpop.f32.mrf.mxu0
  %v155 = vadd.f32 0.0, %v154
  %156 = vmatmul.f32.gmra.mxu0 %v124
  %v157 = vpop.f32.mrf.mxu0
  %v158 = vadd.f32 0.0, %v157
  %159 = vmatmul.f32.gmra.mxu0 %v125
  %v160 = vpop.f32.mrf.mxu0
  %v161 = vadd.f32 0.0, %v160
  %162 = vmatmul.f32.gmra.mxu0 %v126
  %v163 = vpop.f32.mrf.mxu0
  %v164 = vadd.f32 0.0, %v163
  %165 = vmatmul.f32.gmra.mxu0 %v127
  %v166 = vpop.f32.mrf.mxu0
  %v167 = vadd.f32 0.0, %v166
  %168 = vdwg.mxu0
  %170 = vset.pattern.permute.xlu0 0
  %171 = vperm.xlu0 %170, %v36
  %v172 = vpop.permute.xlu0 %171
  %175 = vset.pattern.permute.xlu0 0
  %176 = vperm.xlu0 %175, %v37
  %v177 = vpop.permute.xlu0 %176
  %180 = vset.pattern.permute.xlu0 0
  %181 = vperm.xlu0 %180, %v38
  %v182 = vpop.permute.xlu0 %181
  %185 = vset.pattern.permute.xlu0 0
  %186 = vperm.xlu0 %185, %v39
  %v187 = vpop.permute.xlu0 %186
  %190 = vset.pattern.permute.xlu0 0
  %191 = vperm.xlu0 %190, %v40
  %v192 = vpop.permute.xlu0 %191
  %195 = vset.pattern.permute.xlu0 0
  %196 = vperm.xlu0 %195, %v41
  %v197 = vpop.permute.xlu0 %196
  %200 = vset.pattern.permute.xlu0 0
  %201 = vperm.xlu0 %200, %v42
  %v202 = vpop.permute.xlu0 %201
  %205 = vset.pattern.permute.xlu0 0
  %206 = vperm.xlu0 %205, %v43
  %v207 = vpop.permute.xlu0 %206
  %210 = vset.pattern.permute.xlu0 0
  %211 = vperm.xlu0 %210, %v44
  %v212 = vpop.permute.xlu0 %211
  %215 = vset.pattern.permute.xlu0 0
  %216 = vperm.xlu0 %215, %v45
  %v217 = vpop.permute.xlu0 %216
  %220 = vset.pattern.permute.xlu0 0
  %221 = vperm.xlu0 %220, %v46
  %v222 = vpop.permute.xlu0 %221
  %225 = vset.pattern.permute.xlu0 0
  %226 = vperm.xlu0 %225, %v47
  %v227 = vpop.permute.xlu0 %226
  %230 = vset.pattern.permute.xlu0 0
  %231 = vperm.xlu0 %230, %v48
  %v232 = vpop.permute.xlu0 %231
  %235 = vset.pattern.permute.xlu0 0
  %236 = vperm.xlu0 %235, %v49
  %v237 = vpop.permute.xlu0 %236
  %240 = vset.pattern.permute.xlu0 0
  %241 = vperm.xlu0 %240, %v50
  %v242 = vpop.permute.xlu0 %241
  %245 = vset.pattern.permute.xlu0 0
  %246 = vperm.xlu0 %245, %v51
  %v247 = vpop.permute.xlu0 %246
  %250 = vset.pattern.permute.xlu0 0
  %251 = vperm.xlu0 %250, %v52
  %v252 = vpop.permute.xlu0 %251
  %255 = vset.pattern.permute.xlu0 0
  %256 = vperm.xlu0 %255, %v53
  %v257 = vpop.permute.xlu0 %256
  %260 = vset.pattern.permute.xlu0 0
  %261 = vperm.xlu0 %260, %v54
  %v262 = vpop.permute.xlu0 %261
  %265 = vset.pattern.permute.xlu0 0
  %266 = vperm.xlu0 %265, %v55
  %v267 = vpop.permute.xlu0 %266
  %270 = vset.pattern.permute.xlu0 0
  %271 = vperm.xlu0 %270, %v56
  %v272 = vpop.permute.xlu0 %271
  %275 = vset.pattern.permute.xlu0 0
  %276 = vperm.xlu0 %275, %v57
  %v277 = vpop.permute.xlu0 %276
  %280 = vset.pattern.permute.xlu0 0
  %281 = vperm.xlu0 %280, %v58
  %v282 = vpop.permute.xlu0 %281
  %285 = vset.pattern.permute.xlu0 0
  %286 = vperm.xlu0 %285, %v59
  %v287 = vpop.permute.xlu0 %286
  %290 = vset.pattern.permute.xlu0 0
  %291 = vperm.xlu0 %290, %v60
  %v292 = vpop.permute.xlu0 %291
  %295 = vset.pattern.permute.xlu0 0
  %296 = vperm.xlu0 %295, %v61
  %v297 = vpop.permute.xlu0 %296
  %300 = vset.pattern.permute.xlu0 0
  %301 = vperm.xlu0 %300, %v62
  %v302 = vpop.permute.xlu0 %301
  %305 = vset.pattern.permute.xlu0 0
  %306 = vperm.xlu0 %305, %v63
  %v307 = vpop.permute.xlu0 %306
  %310 = vset.pattern.permute.xlu0 0
  %311 = vperm.xlu0 %310, %v64
  %v312 = vpop.permute.xlu0 %311
  %315 = vset.pattern.permute.xlu0 0
  %316 = vperm.xlu0 %315, %v65
  %v317 = vpop.permute.xlu0 %316
  %320 = vset.pattern.permute.xlu0 0
  %321 = vperm.xlu0 %320, %v66
  %v322 = vpop.permute.xlu0 %321
  %325 = vset.pattern.permute.xlu0 0
  %326 = vperm.xlu0 %325, %v67
  %v327 = vpop.permute.xlu0 %326
  %330 = vset.pattern.permute.xlu0 0
  %331 = vperm.xlu0 %330, %v68
  %v332 = vpop.permute.xlu0 %331
  %335 = vset.pattern.permute.xlu0 0
  %336 = vperm.xlu0 %335, %v69
  %v337 = vpop.permute.xlu0 %336
  %340 = vset.pattern.permute.xlu0 0
  %341 = vperm.xlu0 %340, %v70
  %v342 = vpop.permute.xlu0 %341
  %345 = vset.pattern.permute.xlu0 0
  %346 = vperm.xlu0 %345, %v71
  %v347 = vpop.permute.xlu0 %346
  %350 = vset.pattern.permute.xlu0 0
  %351 = vperm.xlu0 %350, %v72
  %v352 = vpop.permute.xlu0 %351
  %355 = vset.pattern.permute.xlu0 0
  %356 = vperm.xlu0 %355, %v73
  %v357 = vpop.permute.xlu0 %356
  %360 = vset.pattern.permute.xlu0 0
  %361 = vperm.xlu0 %360, %v74
  %v362 = vpop.permute.xlu0 %361
  %365 = vset.pattern.permute.xlu0 0
  %366 = vperm.xlu0 %365, %v75
  %v367 = vpop.permute.xlu0 %366
  %370 = vset.pattern.permute.xlu0 0
  %371 = vperm.xlu0 %370, %v76
  %v372 = vpop.permute.xlu0 %371
  %375 = vset.pattern.permute.xlu0 0
  %376 = vperm.xlu0 %375, %v77
  %v377 = vpop.permute.xlu0 %376
  %380 = vset.pattern.permute.xlu0 0
  %381 = vperm.xlu0 %380, %v78
  %v382 = vpop.permute.xlu0 %381
  %385 = vset.pattern.permute.xlu0 0
  %386 = vperm.xlu0 %385, %v79
  %v387 = vpop.permute.xlu0 %386
  %390 = vset.pattern.permute.xlu0 0
  %391 = vperm.xlu0 %390, %v80
  %v392 = vpop.permute.xlu0 %391
  %395 = vset.pattern.permute.xlu0 0
  %396 = vperm.xlu0 %395, %v81
  %v397 = vpop.permute.xlu0 %396
  %400 = vset.pattern.permute.xlu0 0
  %401 = vperm.xlu0 %400, %v82
  %v402 = vpop.permute.xlu0 %401
  %405 = vset.pattern.permute.xlu0 0
  %406 = vperm.xlu0 %405, %v83
  %v407 = vpop.permute.xlu0 %406
  %410 = vset.pattern.permute.xlu0 0
  %411 = vperm.xlu0 %410, %v84
  %v412 = vpop.permute.xlu0 %411
  %415 = vset.pattern.permute.xlu0 0
  %416 = vperm.xlu0 %415, %v85
  %v417 = vpop.permute.xlu0 %416
  %420 = vset.pattern.permute.xlu0 0
  %421 = vperm.xlu0 %420, %v86
  %v422 = vpop.permute.xlu0 %421
  %425 = vset.pattern.permute.xlu0 0
  %426 = vperm.xlu0 %425, %v87
  %v427 = vpop.permute.xlu0 %426
  %430 = vset.pattern.permute.xlu0 0
  %431 = vperm.xlu0 %430, %v88
  %v432 = vpop.permute.xlu0 %431
  %435 = vset.pattern.permute.xlu0 0
  %436 = vperm.xlu0 %435, %v89
  %v437 = vpop.permute.xlu0 %436
  %440 = vset.pattern.permute.xlu0 0
  %441 = vperm.xlu0 %440, %v90
  %v442 = vpop.permute.xlu0 %441
  %445 = vset.pattern.permute.xlu0 0
  %446 = vperm.xlu0 %445, %v91
  %v447 = vpop.permute.xlu0 %446
  %450 = vset.pattern.permute.xlu0 0
  %451 = vperm.xlu0 %450, %v92
  %v452 = vpop.permute.xlu0 %451
  %455 = vset.pattern.permute.xlu0 0
  %456 = vperm.xlu0 %455, %v93
  %v457 = vpop.permute.xlu0 %456
  %460 = vset.pattern.permute.xlu0 0
  %461 = vperm.xlu0 %460, %v94
  %v462 = vpop.permute.xlu0 %461
  %465 = vset.pattern.permute.xlu0 0
  %466 = vperm.xlu0 %465, %v95
  %v467 = vpop.permute.xlu0 %466
  %470 = vset.pattern.permute.xlu0 0
  %471 = vperm.xlu0 %470, %v96
  %v472 = vpop.permute.xlu0 %471
  %475 = vset.pattern.permute.xlu0 0
  %476 = vperm.xlu0 %475, %v97
  %v477 = vpop.permute.xlu0 %476
  %480 = vset.pattern.permute.xlu0 0
  %481 = vperm.xlu0 %480, %v98
  %v482 = vpop.permute.xlu0 %481
  %485 = vset.pattern.permute.xlu0 0
  %486 = vperm.xlu0 %485, %v99
  %v487 = vpop.permute.xlu0 %486
  %v505 = vperm.slane %v102, 0
  %v506 = vperm.slane %v103, 0
  %v507 = vperm.slane %v104, 0
  %v508 = vperm.slane %v105, 0
  %v509 = vperm.slane %v106, 0
  %v510 = vperm.slane %v107, 0
  %v511 = vperm.slane %v108, 0
  %v512 = vperm.slane %v109, 0
  %v513 = vperm.slane %v110, 0
  %v514 = vperm.slane %v111, 0
  %v515 = vperm.slane %v112, 0
  %v516 = vperm.slane %v113, 0
  %v517 = vperm.slane %v114, 0
  %v518 = vperm.slane %v115, 0
  %v519 = vperm.slane %v116, 0
  %v520 = vperm.slane %v117, 0
  %v537 = vmul.f32 %v172, %v505
  %v538 = vmul.f32 %v177, %v506
  %v539 = vmul.f32 %v182, %v507
  %v540 = vmul.f32 %v187, %v508
  %v541 = vmul.f32 %v192, %v509
  %v542 = vmul.f32 %v197, %v510
  %v543 = vmul.f32 %v202, %v511
  %v544 = vmul.f32 %v207, %v512
  %v545 = vmul.f32 %v212, %v513
  %v546 = vmul.f32 %v217, %v514
  %v547 = vmul.f32 %v222, %v515
  %v548 = vmul.f32 %v227, %v516
  %v549 = vmul.f32 %v232, %v517
  %v550 = vmul.f32 %v237, %v518
  %v551 = vmul.f32 %v242, %v519
  %v552 = vmul.f32 %v247, %v520
  %v553 = vmul.f32 %v252, %v505
  %v554 = vmul.f32 %v257, %v506
  %v555 = vmul.f32 %v262, %v507
  %v556 = vmul.f32 %v267, %v508
  %v557 = vmul.f32 %v272, %v509
  %v558 = vmul.f32 %v277, %v510
  %v559 = vmul.f32 %v282, %v511
  %v560 = vmul.f32 %v287, %v512
  %v561 = vmul.f32 %v292, %v513
  %v562 = vmul.f32 %v297, %v514
  %v563 = vmul.f32 %v302, %v515
  %v564 = vmul.f32 %v307, %v516
  %v565 = vmul.f32 %v312, %v517
  %v566 = vmul.f32 %v317, %v518
  %v567 = vmul.f32 %v322, %v519
  %v568 = vmul.f32 %v327, %v520
  %v569 = vmul.f32 %v332, %v505
  %v570 = vmul.f32 %v337, %v506
  %v571 = vmul.f32 %v342, %v507
  %v572 = vmul.f32 %v347, %v508
  %v573 = vmul.f32 %v352, %v509
  %v574 = vmul.f32 %v357, %v510
  %v575 = vmul.f32 %v362, %v511
  %v576 = vmul.f32 %v367, %v512
  %v577 = vmul.f32 %v372, %v513
  %v578 = vmul.f32 %v377, %v514
  %v579 = vmul.f32 %v382, %v515
  %v580 = vmul.f32 %v387, %v516
  %v581 = vmul.f32 %v392, %v517
  %v582 = vmul.f32 %v397, %v518
  %v583 = vmul.f32 %v402, %v519
  %v584 = vmul.f32 %v407, %v520
  %v585 = vmul.f32 %v412, %v505
  %v586 = vmul.f32 %v417, %v506
  %v587 = vmul.f32 %v422, %v507
  %v588 = vmul.f32 %v427, %v508
  %v589 = vmul.f32 %v432, %v509
  %v590 = vmul.f32 %v437, %v510
  %v591 = vmul.f32 %v442, %v511
  %v592 = vmul.f32 %v447, %v512
  %v593 = vmul.f32 %v452, %v513
  %v594 = vmul.f32 %v457, %v514
  %v595 = vmul.f32 %v462, %v515
  %v596 = vmul.f32 %v467, %v516
  %v597 = vmul.f32 %v472, %v517
  %v598 = vmul.f32 %v477, %v518
  %v599 = vmul.f32 %v482, %v519
  %v600 = vmul.f32 %v487, %v520
  %vm601 = vcmask 257024
  %v602 = vsel %vm601, %v537, -inf
  %603 = vmax.xlane.f32.xlu0 %v602
  %v604 = vpop.xlane.xlu0 %603
  %v605 = vsel %vm601, %v538, -inf
  %606 = vmax.xlane.f32.xlu0 %v605
  %v607 = vpop.xlane.xlu0 %606
  %v608 = vsel %vm601, %v539, -inf
  %609 = vmax.xlane.f32.xlu0 %v608
  %v610 = vpop.xlane.xlu0 %609
  %v611 = vsel %vm601, %v540, -inf
  %612 = vmax.xlane.f32.xlu0 %v611
  %v613 = vpop.xlane.xlu0 %612
  %v614 = vsel %vm601, %v541, -inf
  %615 = vmax.xlane.f32.xlu0 %v614
  %v616 = vpop.xlane.xlu0 %615
  %v617 = vsel %vm601, %v542, -inf
  %618 = vmax.xlane.f32.xlu0 %v617
  %v619 = vpop.xlane.xlu0 %618
  %v620 = vsel %vm601, %v543, -inf
  %621 = vmax.xlane.f32.xlu0 %v620
  %v622 = vpop.xlane.xlu0 %621
  %v623 = vsel %vm601, %v544, -inf
  %624 = vmax.xlane.f32.xlu0 %v623
  %v625 = vpop.xlane.xlu0 %624
  %v626 = vsel %vm601, %v545, -inf
  %627 = vmax.xlane.f32.xlu0 %v626
  %v628 = vpop.xlane.xlu0 %627
  %v629 = vsel %vm601, %v546, -inf
  %630 = vmax.xlane.f32.xlu0 %v629
  %v631 = vpop.xlane.xlu0 %630
  %v632 = vsel %vm601, %v547, -inf
  %633 = vmax.xlane.f32.xlu0 %v632
  %v634 = vpop.xlane.xlu0 %633
  %v635 = vsel %vm601, %v548, -inf
  %636 = vmax.xlane.f32.xlu0 %v635
  %v637 = vpop.xlane.xlu0 %636
  %v638 = vsel %vm601, %v549, -inf
  %639 = vmax.xlane.f32.xlu0 %v638
  %v640 = vpop.xlane.xlu0 %639
  %v641 = vsel %vm601, %v550, -inf
  %642 = vmax.xlane.f32.xlu0 %v641
  %v643 = vpop.xlane.xlu0 %642
  %v644 = vsel %vm601, %v551, -inf
  %645 = vmax.xlane.f32.xlu0 %v644
  %v646 = vpop.xlane.xlu0 %645
  %v647 = vsel %vm601, %v552, -inf
  %648 = vmax.xlane.f32.xlu0 %v647
  %v649 = vpop.xlane.xlu0 %648
  %v650 = vsel %vm601, %v553, -inf
  %651 = vmax.xlane.f32.xlu0 %v650
  %v652 = vpop.xlane.xlu0 %651
  %v653 = vsel %vm601, %v554, -inf
  %654 = vmax.xlane.f32.xlu0 %v653
  %v655 = vpop.xlane.xlu0 %654
  %v656 = vsel %vm601, %v555, -inf
  %657 = vmax.xlane.f32.xlu0 %v656
  %v658 = vpop.xlane.xlu0 %657
  %v659 = vsel %vm601, %v556, -inf
  %660 = vmax.xlane.f32.xlu0 %v659
  %v661 = vpop.xlane.xlu0 %660
  %v662 = vsel %vm601, %v557, -inf
  %663 = vmax.xlane.f32.xlu0 %v662
  %v664 = vpop.xlane.xlu0 %663
  %v665 = vsel %vm601, %v558, -inf
  %666 = vmax.xlane.f32.xlu0 %v665
  %v667 = vpop.xlane.xlu0 %666
  %v668 = vsel %vm601, %v559, -inf
  %669 = vmax.xlane.f32.xlu0 %v668
  %v670 = vpop.xlane.xlu0 %669
  %v671 = vsel %vm601, %v560, -inf
  %672 = vmax.xlane.f32.xlu0 %v671
  %v673 = vpop.xlane.xlu0 %672
  %v674 = vsel %vm601, %v561, -inf
  %675 = vmax.xlane.f32.xlu0 %v674
  %v676 = vpop.xlane.xlu0 %675
  %v677 = vsel %vm601, %v562, -inf
  %678 = vmax.xlane.f32.xlu0 %v677
  %v679 = vpop.xlane.xlu0 %678
  %v680 = vsel %vm601, %v563, -inf
  %681 = vmax.xlane.f32.xlu0 %v680
  %v682 = vpop.xlane.xlu0 %681
  %v683 = vsel %vm601, %v564, -inf
  %684 = vmax.xlane.f32.xlu0 %v683
  %v685 = vpop.xlane.xlu0 %684
  %v686 = vsel %vm601, %v565, -inf
  %687 = vmax.xlane.f32.xlu0 %v686
  %v688 = vpop.xlane.xlu0 %687
  %v689 = vsel %vm601, %v566, -inf
  %690 = vmax.xlane.f32.xlu0 %v689
  %v691 = vpop.xlane.xlu0 %690
  %v692 = vsel %vm601, %v567, -inf
  %693 = vmax.xlane.f32.xlu0 %v692
  %v694 = vpop.xlane.xlu0 %693
  %v695 = vsel %vm601, %v568, -inf
  %696 = vmax.xlane.f32.xlu0 %v695
  %v697 = vpop.xlane.xlu0 %696
  %v698 = vsel %vm601, %v569, -inf
  %699 = vmax.xlane.f32.xlu0 %v698
  %v700 = vpop.xlane.xlu0 %699
  %v701 = vsel %vm601, %v570, -inf
  %702 = vmax.xlane.f32.xlu0 %v701
  %v703 = vpop.xlane.xlu0 %702
  %v704 = vsel %vm601, %v571, -inf
  %705 = vmax.xlane.f32.xlu0 %v704
  %v706 = vpop.xlane.xlu0 %705
  %v707 = vsel %vm601, %v572, -inf
  %708 = vmax.xlane.f32.xlu0 %v707
  %v709 = vpop.xlane.xlu0 %708
  %v710 = vsel %vm601, %v573, -inf
  %711 = vmax.xlane.f32.xlu0 %v710
  %v712 = vpop.xlane.xlu0 %711
  %v713 = vsel %vm601, %v574, -inf
  %714 = vmax.xlane.f32.xlu0 %v713
  %v715 = vpop.xlane.xlu0 %714
  %v716 = vsel %vm601, %v575, -inf
  %717 = vmax.xlane.f32.xlu0 %v716
  %v718 = vpop.xlane.xlu0 %717
  %v719 = vsel %vm601, %v576, -inf
  %720 = vmax.xlane.f32.xlu0 %v719
  %v721 = vpop.xlane.xlu0 %720
  %v722 = vsel %vm601, %v577, -inf
  %723 = vmax.xlane.f32.xlu0 %v722
  %v724 = vpop.xlane.xlu0 %723
  %v725 = vsel %vm601, %v578, -inf
  %726 = vmax.xlane.f32.xlu0 %v725
  %v727 = vpop.xlane.xlu0 %726
  %v728 = vsel %vm601, %v579, -inf
  %729 = vmax.xlane.f32.xlu0 %v728
  %v730 = vpop.xlane.xlu0 %729
  %v731 = vsel %vm601, %v580, -inf
  %732 = vmax.xlane.f32.xlu0 %v731
  %v733 = vpop.xlane.xlu0 %732
  %v734 = vsel %vm601, %v581, -inf
  %735 = vmax.xlane.f32.xlu0 %v734
  %v736 = vpop.xlane.xlu0 %735
  %v737 = vsel %vm601, %v582, -inf
  %738 = vmax.xlane.f32.xlu0 %v737
  %v739 = vpop.xlane.xlu0 %738
  %v740 = vsel %vm601, %v583, -inf
  %741 = vmax.xlane.f32.xlu0 %v740
  %v742 = vpop.xlane.xlu0 %741
  %v743 = vsel %vm601, %v584, -inf
  %744 = vmax.xlane.f32.xlu0 %v743
  %v745 = vpop.xlane.xlu0 %744
  %v746 = vsel %vm601, %v585, -inf
  %747 = vmax.xlane.f32.xlu0 %v746
  %v748 = vpop.xlane.xlu0 %747
  %v749 = vsel %vm601, %v586, -inf
  %750 = vmax.xlane.f32.xlu0 %v749
  %v751 = vpop.xlane.xlu0 %750
  %v752 = vsel %vm601, %v587, -inf
  %753 = vmax.xlane.f32.xlu0 %v752
  %v754 = vpop.xlane.xlu0 %753
  %v755 = vsel %vm601, %v588, -inf
  %756 = vmax.xlane.f32.xlu0 %v755
  %v757 = vpop.xlane.xlu0 %756
  %v758 = vsel %vm601, %v589, -inf
  %759 = vmax.xlane.f32.xlu0 %v758
  %v760 = vpop.xlane.xlu0 %759
  %v761 = vsel %vm601, %v590, -inf
  %762 = vmax.xlane.f32.xlu0 %v761
  %v763 = vpop.xlane.xlu0 %762
  %v764 = vsel %vm601, %v591, -inf
  %765 = vmax.xlane.f32.xlu0 %v764
  %v766 = vpop.xlane.xlu0 %765
  %v767 = vsel %vm601, %v592, -inf
  %768 = vmax.xlane.f32.xlu0 %v767
  %v769 = vpop.xlane.xlu0 %768
  %v770 = vsel %vm601, %v593, -inf
  %771 = vmax.xlane.f32.xlu0 %v770
  %v772 = vpop.xlane.xlu0 %771
  %v773 = vsel %vm601, %v594, -inf
  %774 = vmax.xlane.f32.xlu0 %v773
  %v775 = vpop.xlane.xlu0 %774
  %v776 = vsel %vm601, %v595, -inf
  %777 = vmax.xlane.f32.xlu0 %v776
  %v778 = vpop.xlane.xlu0 %777
  %v779 = vsel %vm601, %v596, -inf
  %780 = vmax.xlane.f32.xlu0 %v779
  %v781 = vpop.xlane.xlu0 %780
  %v782 = vsel %vm601, %v597, -inf
  %783 = vmax.xlane.f32.xlu0 %v782
  %v784 = vpop.xlane.xlu0 %783
  %v785 = vsel %vm601, %v598, -inf
  %786 = vmax.xlane.f32.xlu0 %v785
  %v787 = vpop.xlane.xlu0 %786
  %v788 = vsel %vm601, %v599, -inf
  %789 = vmax.xlane.f32.xlu0 %v788
  %v790 = vpop.xlane.xlu0 %789
  %v791 = vsel %vm601, %v600, -inf
  %792 = vmax.xlane.f32.xlu0 %v791
  %v793 = vpop.xlane.xlu0 %792
  %v794 = vsub.f32 %v537, %v604
  %v795 = vsub.f32 %v538, %v607
  %v796 = vsub.f32 %v539, %v610
  %v797 = vsub.f32 %v540, %v613
  %v798 = vsub.f32 %v541, %v616
  %v799 = vsub.f32 %v542, %v619
  %v800 = vsub.f32 %v543, %v622
  %v801 = vsub.f32 %v544, %v625
  %v802 = vsub.f32 %v545, %v628
  %v803 = vsub.f32 %v546, %v631
  %v804 = vsub.f32 %v547, %v634
  %v805 = vsub.f32 %v548, %v637
  %v806 = vsub.f32 %v549, %v640
  %v807 = vsub.f32 %v550, %v643
  %v808 = vsub.f32 %v551, %v646
  %v809 = vsub.f32 %v552, %v649
  %v810 = vsub.f32 %v553, %v652
  %v811 = vsub.f32 %v554, %v655
  %v812 = vsub.f32 %v555, %v658
  %v813 = vsub.f32 %v556, %v661
  %v814 = vsub.f32 %v557, %v664
  %v815 = vsub.f32 %v558, %v667
  %v816 = vsub.f32 %v559, %v670
  %v817 = vsub.f32 %v560, %v673
  %v818 = vsub.f32 %v561, %v676
  %v819 = vsub.f32 %v562, %v679
  %v820 = vsub.f32 %v563, %v682
  %v821 = vsub.f32 %v564, %v685
  %v822 = vsub.f32 %v565, %v688
  %v823 = vsub.f32 %v566, %v691
  %v824 = vsub.f32 %v567, %v694
  %v825 = vsub.f32 %v568, %v697
  %v826 = vsub.f32 %v569, %v700
  %v827 = vsub.f32 %v570, %v703
  %v828 = vsub.f32 %v571, %v706
  %v829 = vsub.f32 %v572, %v709
  %v830 = vsub.f32 %v573, %v712
  %v831 = vsub.f32 %v574, %v715
  %v832 = vsub.f32 %v575, %v718
  %v833 = vsub.f32 %v576, %v721
  %v834 = vsub.f32 %v577, %v724
  %v835 = vsub.f32 %v578, %v727
  %v836 = vsub.f32 %v579, %v730
  %v837 = vsub.f32 %v580, %v733
  %v838 = vsub.f32 %v581, %v736
  %v839 = vsub.f32 %v582, %v739
  %v840 = vsub.f32 %v583, %v742
  %v841 = vsub.f32 %v584, %v745
  %v842 = vsub.f32 %v585, %v748
  %v843 = vsub.f32 %v586, %v751
  %v844 = vsub.f32 %v587, %v754
  %v845 = vsub.f32 %v588, %v757
  %v846 = vsub.f32 %v589, %v760
  %v847 = vsub.f32 %v590, %v763
  %v848 = vsub.f32 %v591, %v766
  %v849 = vsub.f32 %v592, %v769
  %v850 = vsub.f32 %v593, %v772
  %v851 = vsub.f32 %v594, %v775
  %v852 = vsub.f32 %v595, %v778
  %v853 = vsub.f32 %v596, %v781
  %v854 = vsub.f32 %v597, %v784
  %v855 = vsub.f32 %v598, %v787
  %v856 = vsub.f32 %v599, %v790
  %v857 = vsub.f32 %v600, %v793
  %v858 = vmul.f32 %v794, 1.442695
  %v859 = vpow.pop %v858
  %v860 = vmul.f32 %v795, 1.442695
  %v861 = vpow.pop %v860
  %v862 = vmul.f32 %v796, 1.442695
  %v863 = vpow.pop %v862
  %v864 = vmul.f32 %v797, 1.442695
  %v865 = vpow.pop %v864
  %v866 = vmul.f32 %v798, 1.442695
  %v867 = vpow.pop %v866
  %v868 = vmul.f32 %v799, 1.442695
  %v869 = vpow.pop %v868
  %v870 = vmul.f32 %v800, 1.442695
  %v871 = vpow.pop %v870
  %v872 = vmul.f32 %v801, 1.442695
  %v873 = vpow.pop %v872
  %v874 = vmul.f32 %v802, 1.442695
  %v875 = vpow.pop %v874
  %v876 = vmul.f32 %v803, 1.442695
  %v877 = vpow.pop %v876
  %v878 = vmul.f32 %v804, 1.442695
  %v879 = vpow.pop %v878
  %v880 = vmul.f32 %v805, 1.442695
  %v881 = vpow.pop %v880
  %v882 = vmul.f32 %v806, 1.442695
  %v883 = vpow.pop %v882
  %v884 = vmul.f32 %v807, 1.442695
  %v885 = vpow.pop %v884
  %v886 = vmul.f32 %v808, 1.442695
  %v887 = vpow.pop %v886
  %v888 = vmul.f32 %v809, 1.442695
  %v889 = vpow.pop %v888
  %v890 = vmul.f32 %v810, 1.442695
  %v891 = vpow.pop %v890
  %v892 = vmul.f32 %v811, 1.442695
  %v893 = vpow.pop %v892
  %v894 = vmul.f32 %v812, 1.442695
  %v895 = vpow.pop %v894
  %v896 = vmul.f32 %v813, 1.442695
  %v897 = vpow.pop %v896
  %v898 = vmul.f32 %v814, 1.442695
  %v899 = vpow.pop %v898
  %v900 = vmul.f32 %v815, 1.442695
  %v901 = vpow.pop %v900
  %v902 = vmul.f32 %v816, 1.442695
  %v903 = vpow.pop %v902
  %v904 = vmul.f32 %v817, 1.442695
  %v905 = vpow.pop %v904
  %v906 = vmul.f32 %v818, 1.442695
  %v907 = vpow.pop %v906
  %v908 = vmul.f32 %v819, 1.442695
  %v909 = vpow.pop %v908
  %v910 = vmul.f32 %v820, 1.442695
  %v911 = vpow.pop %v910
  %v912 = vmul.f32 %v821, 1.442695
  %v913 = vpow.pop %v912
  %v914 = vmul.f32 %v822, 1.442695
  %v915 = vpow.pop %v914
  %v916 = vmul.f32 %v823, 1.442695
  %v917 = vpow.pop %v916
  %v918 = vmul.f32 %v824, 1.442695
  %v919 = vpow.pop %v918
  %v920 = vmul.f32 %v825, 1.442695
  %v921 = vpow.pop %v920
  %v922 = vmul.f32 %v826, 1.442695
  %v923 = vpow.pop %v922
  %v924 = vmul.f32 %v827, 1.442695
  %v925 = vpow.pop %v924
  %v926 = vmul.f32 %v828, 1.442695
  %v927 = vpow.pop %v926
  %v928 = vmul.f32 %v829, 1.442695
  %v929 = vpow.pop %v928
  %v930 = vmul.f32 %v830, 1.442695
  %v931 = vpow.pop %v930
  %v932 = vmul.f32 %v831, 1.442695
  %v933 = vpow.pop %v932
  %v934 = vmul.f32 %v832, 1.442695
  %v935 = vpow.pop %v934
  %v936 = vmul.f32 %v833, 1.442695
  %v937 = vpow.pop %v936
  %v938 = vmul.f32 %v834, 1.442695
  %v939 = vpow.pop %v938
  %v940 = vmul.f32 %v835, 1.442695
  %v941 = vpow.pop %v940
  %v942 = vmul.f32 %v836, 1.442695
  %v943 = vpow.pop %v942
  %v944 = vmul.f32 %v837, 1.442695
  %v945 = vpow.pop %v944
  %v946 = vmul.f32 %v838, 1.442695
  %v947 = vpow.pop %v946
  %v948 = vmul.f32 %v839, 1.442695
  %v949 = vpow.pop %v948
  %v950 = vmul.f32 %v840, 1.442695
  %v951 = vpow.pop %v950
  %v952 = vmul.f32 %v841, 1.442695
  %v953 = vpow.pop %v952
  %v954 = vmul.f32 %v842, 1.442695
  %v955 = vpow.pop %v954
  %v956 = vmul.f32 %v843, 1.442695
  %v957 = vpow.pop %v956
  %v958 = vmul.f32 %v844, 1.442695
  %v959 = vpow.pop %v958
  %v960 = vmul.f32 %v845, 1.442695
  %v961 = vpow.pop %v960
  %v962 = vmul.f32 %v846, 1.442695
  %v963 = vpow.pop %v962
  %v964 = vmul.f32 %v847, 1.442695
  %v965 = vpow.pop %v964
  %v966 = vmul.f32 %v848, 1.442695
  %v967 = vpow.pop %v966
  %v968 = vmul.f32 %v849, 1.442695
  %v969 = vpow.pop %v968
  %v970 = vmul.f32 %v850, 1.442695
  %v971 = vpow.pop %v970
  %v972 = vmul.f32 %v851, 1.442695
  %v973 = vpow.pop %v972
  %v974 = vmul.f32 %v852, 1.442695
  %v975 = vpow.pop %v974
  %v976 = vmul.f32 %v853, 1.442695
  %v977 = vpow.pop %v976
  %v978 = vmul.f32 %v854, 1.442695
  %v979 = vpow.pop %v978
  %v980 = vmul.f32 %v855, 1.442695
  %v981 = vpow.pop %v980
  %v982 = vmul.f32 %v856, 1.442695
  %v983 = vpow.pop %v982
  %v984 = vmul.f32 %v857, 1.442695
  %v985 = vpow.pop %v984
  %v986 = vsel %vm601, %v859, 0.0
  %987 = vadd.xlane.f32.xlu0 %v986
  %v988 = vpop.xlane.xlu0 %987
  %v989 = vsel %vm601, %v861, 0.0
  %990 = vadd.xlane.f32.xlu0 %v989
  %v991 = vpop.xlane.xlu0 %990
  %v992 = vsel %vm601, %v863, 0.0
  %993 = vadd.xlane.f32.xlu0 %v992
  %v994 = vpop.xlane.xlu0 %993
  %v995 = vsel %vm601, %v865, 0.0
  %996 = vadd.xlane.f32.xlu0 %v995
  %v997 = vpop.xlane.xlu0 %996
  %v998 = vsel %vm601, %v867, 0.0
  %999 = vadd.xlane.f32.xlu0 %v998
  %v1000 = vpop.xlane.xlu0 %999
  %v1001 = vsel %vm601, %v869, 0.0
  %1002 = vadd.xlane.f32.xlu0 %v1001
  %v1003 = vpop.xlane.xlu0 %1002
  %v1004 = vsel %vm601, %v871, 0.0
  %1005 = vadd.xlane.f32.xlu0 %v1004
  %v1006 = vpop.xlane.xlu0 %1005
  %v1007 = vsel %vm601, %v873, 0.0
  %1008 = vadd.xlane.f32.xlu0 %v1007
  %v1009 = vpop.xlane.xlu0 %1008
  %v1010 = vsel %vm601, %v875, 0.0
  %1011 = vadd.xlane.f32.xlu0 %v1010
  %v1012 = vpop.xlane.xlu0 %1011
  %v1013 = vsel %vm601, %v877, 0.0
  %1014 = vadd.xlane.f32.xlu0 %v1013
  %v1015 = vpop.xlane.xlu0 %1014
  %v1016 = vsel %vm601, %v879, 0.0
  %1017 = vadd.xlane.f32.xlu0 %v1016
  %v1018 = vpop.xlane.xlu0 %1017
  %v1019 = vsel %vm601, %v881, 0.0
  %1020 = vadd.xlane.f32.xlu0 %v1019
  %v1021 = vpop.xlane.xlu0 %1020
  %v1022 = vsel %vm601, %v883, 0.0
  %1023 = vadd.xlane.f32.xlu0 %v1022
  %v1024 = vpop.xlane.xlu0 %1023
  %v1025 = vsel %vm601, %v885, 0.0
  %1026 = vadd.xlane.f32.xlu0 %v1025
  %v1027 = vpop.xlane.xlu0 %1026
  %v1028 = vsel %vm601, %v887, 0.0
  %1029 = vadd.xlane.f32.xlu0 %v1028
  %v1030 = vpop.xlane.xlu0 %1029
  %v1031 = vsel %vm601, %v889, 0.0
  %1032 = vadd.xlane.f32.xlu0 %v1031
  %v1033 = vpop.xlane.xlu0 %1032
  %v1034 = vsel %vm601, %v891, 0.0
  %1035 = vadd.xlane.f32.xlu0 %v1034
  %v1036 = vpop.xlane.xlu0 %1035
  %v1037 = vsel %vm601, %v893, 0.0
  %1038 = vadd.xlane.f32.xlu0 %v1037
  %v1039 = vpop.xlane.xlu0 %1038
  %v1040 = vsel %vm601, %v895, 0.0
  %1041 = vadd.xlane.f32.xlu0 %v1040
  %v1042 = vpop.xlane.xlu0 %1041
  %v1043 = vsel %vm601, %v897, 0.0
  %1044 = vadd.xlane.f32.xlu0 %v1043
  %v1045 = vpop.xlane.xlu0 %1044
  %v1046 = vsel %vm601, %v899, 0.0
  %1047 = vadd.xlane.f32.xlu0 %v1046
  %v1048 = vpop.xlane.xlu0 %1047
  %v1049 = vsel %vm601, %v901, 0.0
  %1050 = vadd.xlane.f32.xlu0 %v1049
  %v1051 = vpop.xlane.xlu0 %1050
  %v1052 = vsel %vm601, %v903, 0.0
  %1053 = vadd.xlane.f32.xlu0 %v1052
  %v1054 = vpop.xlane.xlu0 %1053
  %v1055 = vsel %vm601, %v905, 0.0
  %1056 = vadd.xlane.f32.xlu0 %v1055
  %v1057 = vpop.xlane.xlu0 %1056
  %v1058 = vsel %vm601, %v907, 0.0
  %1059 = vadd.xlane.f32.xlu0 %v1058
  %v1060 = vpop.xlane.xlu0 %1059
  %v1061 = vsel %vm601, %v909, 0.0
  %1062 = vadd.xlane.f32.xlu0 %v1061
  %v1063 = vpop.xlane.xlu0 %1062
  %v1064 = vsel %vm601, %v911, 0.0
  %1065 = vadd.xlane.f32.xlu0 %v1064
  %v1066 = vpop.xlane.xlu0 %1065
  %v1067 = vsel %vm601, %v913, 0.0
  %1068 = vadd.xlane.f32.xlu0 %v1067
  %v1069 = vpop.xlane.xlu0 %1068
  %v1070 = vsel %vm601, %v915, 0.0
  %1071 = vadd.xlane.f32.xlu0 %v1070
  %v1072 = vpop.xlane.xlu0 %1071
  %v1073 = vsel %vm601, %v917, 0.0
  %1074 = vadd.xlane.f32.xlu0 %v1073
  %v1075 = vpop.xlane.xlu0 %1074
  %v1076 = vsel %vm601, %v919, 0.0
  %1077 = vadd.xlane.f32.xlu0 %v1076
  %v1078 = vpop.xlane.xlu0 %1077
  %v1079 = vsel %vm601, %v921, 0.0
  %1080 = vadd.xlane.f32.xlu0 %v1079
  %v1081 = vpop.xlane.xlu0 %1080
  %v1082 = vsel %vm601, %v923, 0.0
  %1083 = vadd.xlane.f32.xlu0 %v1082
  %v1084 = vpop.xlane.xlu0 %1083
  %v1085 = vsel %vm601, %v925, 0.0
  %1086 = vadd.xlane.f32.xlu0 %v1085
  %v1087 = vpop.xlane.xlu0 %1086
  %v1088 = vsel %vm601, %v927, 0.0
  %1089 = vadd.xlane.f32.xlu0 %v1088
  %v1090 = vpop.xlane.xlu0 %1089
  %v1091 = vsel %vm601, %v929, 0.0
  %1092 = vadd.xlane.f32.xlu0 %v1091
  %v1093 = vpop.xlane.xlu0 %1092
  %v1094 = vsel %vm601, %v931, 0.0
  %1095 = vadd.xlane.f32.xlu0 %v1094
  %v1096 = vpop.xlane.xlu0 %1095
  %v1097 = vsel %vm601, %v933, 0.0
  %1098 = vadd.xlane.f32.xlu0 %v1097
  %v1099 = vpop.xlane.xlu0 %1098
  %v1100 = vsel %vm601, %v935, 0.0
  %1101 = vadd.xlane.f32.xlu0 %v1100
  %v1102 = vpop.xlane.xlu0 %1101
  %v1103 = vsel %vm601, %v937, 0.0
  %1104 = vadd.xlane.f32.xlu0 %v1103
  %v1105 = vpop.xlane.xlu0 %1104
  %v1106 = vsel %vm601, %v939, 0.0
  %1107 = vadd.xlane.f32.xlu0 %v1106
  %v1108 = vpop.xlane.xlu0 %1107
  %v1109 = vsel %vm601, %v941, 0.0
  %1110 = vadd.xlane.f32.xlu0 %v1109
  %v1111 = vpop.xlane.xlu0 %1110
  %v1112 = vsel %vm601, %v943, 0.0
  %1113 = vadd.xlane.f32.xlu0 %v1112
  %v1114 = vpop.xlane.xlu0 %1113
  %v1115 = vsel %vm601, %v945, 0.0
  %1116 = vadd.xlane.f32.xlu0 %v1115
  %v1117 = vpop.xlane.xlu0 %1116
  %v1118 = vsel %vm601, %v947, 0.0
  %1119 = vadd.xlane.f32.xlu0 %v1118
  %v1120 = vpop.xlane.xlu0 %1119
  %v1121 = vsel %vm601, %v949, 0.0
  %1122 = vadd.xlane.f32.xlu0 %v1121
  %v1123 = vpop.xlane.xlu0 %1122
  %v1124 = vsel %vm601, %v951, 0.0
  %1125 = vadd.xlane.f32.xlu0 %v1124
  %v1126 = vpop.xlane.xlu0 %1125
  %v1127 = vsel %vm601, %v953, 0.0
  %1128 = vadd.xlane.f32.xlu0 %v1127
  %v1129 = vpop.xlane.xlu0 %1128
  %v1130 = vsel %vm601, %v955, 0.0
  %1131 = vadd.xlane.f32.xlu0 %v1130
  %v1132 = vpop.xlane.xlu0 %1131
  %v1133 = vsel %vm601, %v957, 0.0
  %1134 = vadd.xlane.f32.xlu0 %v1133
  %v1135 = vpop.xlane.xlu0 %1134
  %v1136 = vsel %vm601, %v959, 0.0
  %1137 = vadd.xlane.f32.xlu0 %v1136
  %v1138 = vpop.xlane.xlu0 %1137
  %v1139 = vsel %vm601, %v961, 0.0
  %1140 = vadd.xlane.f32.xlu0 %v1139
  %v1141 = vpop.xlane.xlu0 %1140
  %v1142 = vsel %vm601, %v963, 0.0
  %1143 = vadd.xlane.f32.xlu0 %v1142
  %v1144 = vpop.xlane.xlu0 %1143
  %v1145 = vsel %vm601, %v965, 0.0
  %1146 = vadd.xlane.f32.xlu0 %v1145
  %v1147 = vpop.xlane.xlu0 %1146
  %v1148 = vsel %vm601, %v967, 0.0
  %1149 = vadd.xlane.f32.xlu0 %v1148
  %v1150 = vpop.xlane.xlu0 %1149
  %v1151 = vsel %vm601, %v969, 0.0
  %1152 = vadd.xlane.f32.xlu0 %v1151
  %v1153 = vpop.xlane.xlu0 %1152
  %v1154 = vsel %vm601, %v971, 0.0
  %1155 = vadd.xlane.f32.xlu0 %v1154
  %v1156 = vpop.xlane.xlu0 %1155
  %v1157 = vsel %vm601, %v973, 0.0
  %1158 = vadd.xlane.f32.xlu0 %v1157
  %v1159 = vpop.xlane.xlu0 %1158
  %v1160 = vsel %vm601, %v975, 0.0
  %1161 = vadd.xlane.f32.xlu0 %v1160
  %v1162 = vpop.xlane.xlu0 %1161
  %v1163 = vsel %vm601, %v977, 0.0
  %1164 = vadd.xlane.f32.xlu0 %v1163
  %v1165 = vpop.xlane.xlu0 %1164
  %v1166 = vsel %vm601, %v979, 0.0
  %1167 = vadd.xlane.f32.xlu0 %v1166
  %v1168 = vpop.xlane.xlu0 %1167
  %v1169 = vsel %vm601, %v981, 0.0
  %1170 = vadd.xlane.f32.xlu0 %v1169
  %v1171 = vpop.xlane.xlu0 %1170
  %v1172 = vsel %vm601, %v983, 0.0
  %1173 = vadd.xlane.f32.xlu0 %v1172
  %v1174 = vpop.xlane.xlu0 %1173
  %v1175 = vsel %vm601, %v985, 0.0
  %1176 = vadd.xlane.f32.xlu0 %v1175
  %v1177 = vpop.xlane.xlu0 %1176
  %v1178 = vlog2.pop %v988
  %v1179 = vmul.f32 %v1178, 0.6931472
  %v1180 = vlog2.pop %v991
  %v1181 = vmul.f32 %v1180, 0.6931472
  %v1182 = vlog2.pop %v994
  %v1183 = vmul.f32 %v1182, 0.6931472
  %v1184 = vlog2.pop %v997
  %v1185 = vmul.f32 %v1184, 0.6931472
  %v1186 = vlog2.pop %v1000
  %v1187 = vmul.f32 %v1186, 0.6931472
  %v1188 = vlog2.pop %v1003
  %v1189 = vmul.f32 %v1188, 0.6931472
  %v1190 = vlog2.pop %v1006
  %v1191 = vmul.f32 %v1190, 0.6931472
  %v1192 = vlog2.pop %v1009
  %v1193 = vmul.f32 %v1192, 0.6931472
  %v1194 = vlog2.pop %v1012
  %v1195 = vmul.f32 %v1194, 0.6931472
  %v1196 = vlog2.pop %v1015
  %v1197 = vmul.f32 %v1196, 0.6931472
  %v1198 = vlog2.pop %v1018
  %v1199 = vmul.f32 %v1198, 0.6931472
  %v1200 = vlog2.pop %v1021
  %v1201 = vmul.f32 %v1200, 0.6931472
  %v1202 = vlog2.pop %v1024
  %v1203 = vmul.f32 %v1202, 0.6931472
  %v1204 = vlog2.pop %v1027
  %v1205 = vmul.f32 %v1204, 0.6931472
  %v1206 = vlog2.pop %v1030
  %v1207 = vmul.f32 %v1206, 0.6931472
  %v1208 = vlog2.pop %v1033
  %v1209 = vmul.f32 %v1208, 0.6931472
  %v1210 = vlog2.pop %v1036
  %v1211 = vmul.f32 %v1210, 0.6931472
  %v1212 = vlog2.pop %v1039
  %v1213 = vmul.f32 %v1212, 0.6931472
  %v1214 = vlog2.pop %v1042
  %v1215 = vmul.f32 %v1214, 0.6931472
  %v1216 = vlog2.pop %v1045
  %v1217 = vmul.f32 %v1216, 0.6931472
  %v1218 = vlog2.pop %v1048
  %v1219 = vmul.f32 %v1218, 0.6931472
  %v1220 = vlog2.pop %v1051
  %v1221 = vmul.f32 %v1220, 0.6931472
  %v1222 = vlog2.pop %v1054
  %v1223 = vmul.f32 %v1222, 0.6931472
  %v1224 = vlog2.pop %v1057
  %v1225 = vmul.f32 %v1224, 0.6931472
  %v1226 = vlog2.pop %v1060
  %v1227 = vmul.f32 %v1226, 0.6931472
  %v1228 = vlog2.pop %v1063
  %v1229 = vmul.f32 %v1228, 0.6931472
  %v1230 = vlog2.pop %v1066
  %v1231 = vmul.f32 %v1230, 0.6931472
  %v1232 = vlog2.pop %v1069
  %v1233 = vmul.f32 %v1232, 0.6931472
  %v1234 = vlog2.pop %v1072
  %v1235 = vmul.f32 %v1234, 0.6931472
  %v1236 = vlog2.pop %v1075
  %v1237 = vmul.f32 %v1236, 0.6931472
  %v1238 = vlog2.pop %v1078
  %v1239 = vmul.f32 %v1238, 0.6931472
  %v1240 = vlog2.pop %v1081
  %v1241 = vmul.f32 %v1240, 0.6931472
  %v1242 = vlog2.pop %v1084
  %v1243 = vmul.f32 %v1242, 0.6931472
  %v1244 = vlog2.pop %v1087
  %v1245 = vmul.f32 %v1244, 0.6931472
  %v1246 = vlog2.pop %v1090
  %v1247 = vmul.f32 %v1246, 0.6931472
  %v1248 = vlog2.pop %v1093
  %v1249 = vmul.f32 %v1248, 0.6931472
  %v1250 = vlog2.pop %v1096
  %v1251 = vmul.f32 %v1250, 0.6931472
  %v1252 = vlog2.pop %v1099
  %v1253 = vmul.f32 %v1252, 0.6931472
  %v1254 = vlog2.pop %v1102
  %v1255 = vmul.f32 %v1254, 0.6931472
  %v1256 = vlog2.pop %v1105
  %v1257 = vmul.f32 %v1256, 0.6931472
  %v1258 = vlog2.pop %v1108
  %v1259 = vmul.f32 %v1258, 0.6931472
  %v1260 = vlog2.pop %v1111
  %v1261 = vmul.f32 %v1260, 0.6931472
  %v1262 = vlog2.pop %v1114
  %v1263 = vmul.f32 %v1262, 0.6931472
  %v1264 = vlog2.pop %v1117
  %v1265 = vmul.f32 %v1264, 0.6931472
  %v1266 = vlog2.pop %v1120
  %v1267 = vmul.f32 %v1266, 0.6931472
  %v1268 = vlog2.pop %v1123
  %v1269 = vmul.f32 %v1268, 0.6931472
  %v1270 = vlog2.pop %v1126
  %v1271 = vmul.f32 %v1270, 0.6931472
  %v1272 = vlog2.pop %v1129
  %v1273 = vmul.f32 %v1272, 0.6931472
  %v1274 = vlog2.pop %v1132
  %v1275 = vmul.f32 %v1274, 0.6931472
  %v1276 = vlog2.pop %v1135
  %v1277 = vmul.f32 %v1276, 0.6931472
  %v1278 = vlog2.pop %v1138
  %v1279 = vmul.f32 %v1278, 0.6931472
  %v1280 = vlog2.pop %v1141
  %v1281 = vmul.f32 %v1280, 0.6931472
  %v1282 = vlog2.pop %v1144
  %v1283 = vmul.f32 %v1282, 0.6931472
  %v1284 = vlog2.pop %v1147
  %v1285 = vmul.f32 %v1284, 0.6931472
  %v1286 = vlog2.pop %v1150
  %v1287 = vmul.f32 %v1286, 0.6931472
  %v1288 = vlog2.pop %v1153
  %v1289 = vmul.f32 %v1288, 0.6931472
  %v1290 = vlog2.pop %v1156
  %v1291 = vmul.f32 %v1290, 0.6931472
  %v1292 = vlog2.pop %v1159
  %v1293 = vmul.f32 %v1292, 0.6931472
  %v1294 = vlog2.pop %v1162
  %v1295 = vmul.f32 %v1294, 0.6931472
  %v1296 = vlog2.pop %v1165
  %v1297 = vmul.f32 %v1296, 0.6931472
  %v1298 = vlog2.pop %v1168
  %v1299 = vmul.f32 %v1298, 0.6931472
  %v1300 = vlog2.pop %v1171
  %v1301 = vmul.f32 %v1300, 0.6931472
  %v1302 = vlog2.pop %v1174
  %v1303 = vmul.f32 %v1302, 0.6931472
  %v1304 = vlog2.pop %v1177
  %v1305 = vmul.f32 %v1304, 0.6931472
  %v1306 = vadd.f32 %v1179, %v604
  %v1307 = vadd.f32 %v1181, %v607
  %v1308 = vadd.f32 %v1183, %v610
  %v1309 = vadd.f32 %v1185, %v613
  %v1310 = vadd.f32 %v1187, %v616
  %v1311 = vadd.f32 %v1189, %v619
  %v1312 = vadd.f32 %v1191, %v622
  %v1313 = vadd.f32 %v1193, %v625
  %v1314 = vadd.f32 %v1195, %v628
  %v1315 = vadd.f32 %v1197, %v631
  %v1316 = vadd.f32 %v1199, %v634
  %v1317 = vadd.f32 %v1201, %v637
  %v1318 = vadd.f32 %v1203, %v640
  %v1319 = vadd.f32 %v1205, %v643
  %v1320 = vadd.f32 %v1207, %v646
  %v1321 = vadd.f32 %v1209, %v649
  %v1322 = vadd.f32 %v1211, %v652
  %v1323 = vadd.f32 %v1213, %v655
  %v1324 = vadd.f32 %v1215, %v658
  %v1325 = vadd.f32 %v1217, %v661
  %v1326 = vadd.f32 %v1219, %v664
  %v1327 = vadd.f32 %v1221, %v667
  %v1328 = vadd.f32 %v1223, %v670
  %v1329 = vadd.f32 %v1225, %v673
  %v1330 = vadd.f32 %v1227, %v676
  %v1331 = vadd.f32 %v1229, %v679
  %v1332 = vadd.f32 %v1231, %v682
  %v1333 = vadd.f32 %v1233, %v685
  %v1334 = vadd.f32 %v1235, %v688
  %v1335 = vadd.f32 %v1237, %v691
  %v1336 = vadd.f32 %v1239, %v694
  %v1337 = vadd.f32 %v1241, %v697
  %v1338 = vadd.f32 %v1243, %v700
  %v1339 = vadd.f32 %v1245, %v703
  %v1340 = vadd.f32 %v1247, %v706
  %v1341 = vadd.f32 %v1249, %v709
  %v1342 = vadd.f32 %v1251, %v712
  %v1343 = vadd.f32 %v1253, %v715
  %v1344 = vadd.f32 %v1255, %v718
  %v1345 = vadd.f32 %v1257, %v721
  %v1346 = vadd.f32 %v1259, %v724
  %v1347 = vadd.f32 %v1261, %v727
  %v1348 = vadd.f32 %v1263, %v730
  %v1349 = vadd.f32 %v1265, %v733
  %v1350 = vadd.f32 %v1267, %v736
  %v1351 = vadd.f32 %v1269, %v739
  %v1352 = vadd.f32 %v1271, %v742
  %v1353 = vadd.f32 %v1273, %v745
  %v1354 = vadd.f32 %v1275, %v748
  %v1355 = vadd.f32 %v1277, %v751
  %v1356 = vadd.f32 %v1279, %v754
  %v1357 = vadd.f32 %v1281, %v757
  %v1358 = vadd.f32 %v1283, %v760
  %v1359 = vadd.f32 %v1285, %v763
  %v1360 = vadd.f32 %v1287, %v766
  %v1361 = vadd.f32 %v1289, %v769
  %v1362 = vadd.f32 %v1291, %v772
  %v1363 = vadd.f32 %v1293, %v775
  %v1364 = vadd.f32 %v1295, %v778
  %v1365 = vadd.f32 %v1297, %v781
  %v1366 = vadd.f32 %v1299, %v784
  %v1367 = vadd.f32 %v1301, %v787
  %v1368 = vadd.f32 %v1303, %v790
  %v1369 = vadd.f32 %v1305, %v793
  %v1434 = vlaneseq
  %v1435 = vand.u32 %v1434, 127
  %v1436 = vperm.slane %v1306, %v1435
  %v1437 = vperm.slane %v1307, %v1435
  %v1438 = vperm.slane %v1308, %v1435
  %v1439 = vperm.slane %v1309, %v1435
  %v1440 = vperm.slane %v1310, %v1435
  %v1441 = vperm.slane %v1311, %v1435
  %v1442 = vperm.slane %v1312, %v1435
  %v1443 = vperm.slane %v1313, %v1435
  %v1444 = vperm.slane %v1314, %v1435
  %v1445 = vperm.slane %v1315, %v1435
  %v1446 = vperm.slane %v1316, %v1435
  %v1447 = vperm.slane %v1317, %v1435
  %v1448 = vperm.slane %v1318, %v1435
  %v1449 = vperm.slane %v1319, %v1435
  %v1450 = vperm.slane %v1320, %v1435
  %v1451 = vperm.slane %v1321, %v1435
  %v1452 = vperm.slane %v1322, %v1435
  %v1453 = vperm.slane %v1323, %v1435
  %v1454 = vperm.slane %v1324, %v1435
  %v1455 = vperm.slane %v1325, %v1435
  %v1456 = vperm.slane %v1326, %v1435
  %v1457 = vperm.slane %v1327, %v1435
  %v1458 = vperm.slane %v1328, %v1435
  %v1459 = vperm.slane %v1329, %v1435
  %v1460 = vperm.slane %v1330, %v1435
  %v1461 = vperm.slane %v1331, %v1435
  %v1462 = vperm.slane %v1332, %v1435
  %v1463 = vperm.slane %v1333, %v1435
  %v1464 = vperm.slane %v1334, %v1435
  %v1465 = vperm.slane %v1335, %v1435
  %v1466 = vperm.slane %v1336, %v1435
  %v1467 = vperm.slane %v1337, %v1435
  %v1468 = vperm.slane %v1338, %v1435
  %v1469 = vperm.slane %v1339, %v1435
  %v1470 = vperm.slane %v1340, %v1435
  %v1471 = vperm.slane %v1341, %v1435
  %v1472 = vperm.slane %v1342, %v1435
  %v1473 = vperm.slane %v1343, %v1435
  %v1474 = vperm.slane %v1344, %v1435
  %v1475 = vperm.slane %v1345, %v1435
  %v1476 = vperm.slane %v1346, %v1435
  %v1477 = vperm.slane %v1347, %v1435
  %v1478 = vperm.slane %v1348, %v1435
  %v1479 = vperm.slane %v1349, %v1435
  %v1480 = vperm.slane %v1350, %v1435
  %v1481 = vperm.slane %v1351, %v1435
  %v1482 = vperm.slane %v1352, %v1435
  %v1483 = vperm.slane %v1353, %v1435
  %v1484 = vperm.slane %v1354, %v1435
  %v1485 = vperm.slane %v1355, %v1435
  %v1486 = vperm.slane %v1356, %v1435
  %v1487 = vperm.slane %v1357, %v1435
  %v1488 = vperm.slane %v1358, %v1435
  %v1489 = vperm.slane %v1359, %v1435
  %v1490 = vperm.slane %v1360, %v1435
  %v1491 = vperm.slane %v1361, %v1435
  %v1492 = vperm.slane %v1362, %v1435
  %v1493 = vperm.slane %v1363, %v1435
  %v1494 = vperm.slane %v1364, %v1435
  %v1495 = vperm.slane %v1365, %v1435
  %v1496 = vperm.slane %v1366, %v1435
  %v1497 = vperm.slane %v1367, %v1435
  %v1498 = vperm.slane %v1368, %v1435
  %v1499 = vperm.slane %v1369, %v1435
  %vm1500 = vcmask 1041409
  %v1501 = vsel %vm1500, %v1437, %v1436
  %vm1502 = vcmask 1042434
  %v1503 = vsel %vm1502, %v1438, %v1501
  %vm1504 = vcmask 1043459
  %v1505 = vsel %vm1504, %v1439, %v1503
  %vm1506 = vcmask 1044484
  %v1507 = vsel %vm1506, %v1440, %v1505
  %vm1508 = vcmask 1045509
  %v1509 = vsel %vm1508, %v1441, %v1507
  %vm1510 = vcmask 1046534
  %v1511 = vsel %vm1510, %v1442, %v1509
  %vm1512 = vcmask 1047559
  %v1513 = vsel %vm1512, %v1443, %v1511
  %v1514 = vsel %vm1500, %v1445, %v1444
  %v1515 = vsel %vm1502, %v1446, %v1514
  %v1516 = vsel %vm1504, %v1447, %v1515
  %v1517 = vsel %vm1506, %v1448, %v1516
  %v1518 = vsel %vm1508, %v1449, %v1517
  %v1519 = vsel %vm1510, %v1450, %v1518
  %v1520 = vsel %vm1512, %v1451, %v1519
  %v1521 = vsel %vm1500, %v1453, %v1452
  %v1522 = vsel %vm1502, %v1454, %v1521
  %v1523 = vsel %vm1504, %v1455, %v1522
  %v1524 = vsel %vm1506, %v1456, %v1523
  %v1525 = vsel %vm1508, %v1457, %v1524
  %v1526 = vsel %vm1510, %v1458, %v1525
  %v1527 = vsel %vm1512, %v1459, %v1526
  %v1528 = vsel %vm1500, %v1461, %v1460
  %v1529 = vsel %vm1502, %v1462, %v1528
  %v1530 = vsel %vm1504, %v1463, %v1529
  %v1531 = vsel %vm1506, %v1464, %v1530
  %v1532 = vsel %vm1508, %v1465, %v1531
  %v1533 = vsel %vm1510, %v1466, %v1532
  %v1534 = vsel %vm1512, %v1467, %v1533
  %v1535 = vsel %vm1500, %v1469, %v1468
  %v1536 = vsel %vm1502, %v1470, %v1535
  %v1537 = vsel %vm1504, %v1471, %v1536
  %v1538 = vsel %vm1506, %v1472, %v1537
  %v1539 = vsel %vm1508, %v1473, %v1538
  %v1540 = vsel %vm1510, %v1474, %v1539
  %v1541 = vsel %vm1512, %v1475, %v1540
  %v1542 = vsel %vm1500, %v1477, %v1476
  %v1543 = vsel %vm1502, %v1478, %v1542
  %v1544 = vsel %vm1504, %v1479, %v1543
  %v1545 = vsel %vm1506, %v1480, %v1544
  %v1546 = vsel %vm1508, %v1481, %v1545
  %v1547 = vsel %vm1510, %v1482, %v1546
  %v1548 = vsel %vm1512, %v1483, %v1547
  %v1549 = vsel %vm1500, %v1485, %v1484
  %v1550 = vsel %vm1502, %v1486, %v1549
  %v1551 = vsel %vm1504, %v1487, %v1550
  %v1552 = vsel %vm1506, %v1488, %v1551
  %v1553 = vsel %vm1508, %v1489, %v1552
  %v1554 = vsel %vm1510, %v1490, %v1553
  %v1555 = vsel %vm1512, %v1491, %v1554
  %v1556 = vsel %vm1500, %v1493, %v1492
  %v1557 = vsel %vm1502, %v1494, %v1556
  %v1558 = vsel %vm1504, %v1495, %v1557
  %v1559 = vsel %vm1506, %v1496, %v1558
  %v1560 = vsel %vm1508, %v1497, %v1559
  %v1561 = vsel %vm1510, %v1498, %v1560
  %v1562 = vsel %vm1512, %v1499, %v1561
  %vm1563 = vcmask 31744
  %v1564 = vsel %vm1563, %v1513, 0
  %v1566 = vsel %vm1563, %v1520, 0
  %v1568 = vsel %vm1563, %v1527, 0
  %v1570 = vsel %vm1563, %v1534, 0
  %v1572 = vsel %vm1563, %v1541, 0
  %v1574 = vsel %vm1563, %v1548, 0
  %v1576 = vsel %vm1563, %v1555, 0
  %v1578 = vsel %vm1563, %v1562, 0
  %v1581 = vsel %vm1563, %v27, 0
  %1583 = vmatpush.xpose.msra.mxu0 0.0
  %1584 = vmatpush.xpose.msra.mxu0 0.0
  %1585 = vmatpush.xpose.msra.mxu0 0.0
  %1586 = vmatpush.xpose.msra.mxu0 0.0
  %1587 = vmatpush.xpose.msra.mxu0 0.0
  %1588 = vmatpush.xpose.msra.mxu0 0.0
  %1589 = vmatpush.xpose.msra.mxu0 0.0
  %1590 = vmatpush.xpose.msra.mxu0 0.0
  %1591 = vmatpush.xpose.msra.mxu0 0.0
  %1592 = vmatpush.xpose.msra.mxu0 0.0
  %1593 = vmatpush.xpose.msra.mxu0 0.0
  %1594 = vmatpush.xpose.msra.mxu0 0.0
  %1595 = vmatpush.xpose.msra.mxu0 0.0
  %1596 = vmatpush.xpose.msra.mxu0 0.0
  %1597 = vmatpush.xpose.msra.mxu0 0.0
  %1598 = vmatpush.xpose.msra.mxu0 %v1581
  %1599 = vmatmul.f32.gmra.mxu0 %v1564
  %v1600 = vpop.f32.mrf.mxu0
  %v1601 = vadd.f32 0.0, %v1600
  %1602 = vmatmul.f32.gmra.mxu0 %v1566
  %v1603 = vpop.f32.mrf.mxu0
  %v1604 = vadd.f32 0.0, %v1603
  %1605 = vmatmul.f32.gmra.mxu0 %v1568
  %v1606 = vpop.f32.mrf.mxu0
  %v1607 = vadd.f32 0.0, %v1606
  %1608 = vmatmul.f32.gmra.mxu0 %v1570
  %v1609 = vpop.f32.mrf.mxu0
  %v1610 = vadd.f32 0.0, %v1609
  %1611 = vmatmul.f32.gmra.mxu0 %v1572
  %v1612 = vpop.f32.mrf.mxu0
  %v1613 = vadd.f32 0.0, %v1612
  %1614 = vmatmul.f32.gmra.mxu0 %v1574
  %v1615 = vpop.f32.mrf.mxu0
  %v1616 = vadd.f32 0.0, %v1615
  %1617 = vmatmul.f32.gmra.mxu0 %v1576
  %v1618 = vpop.f32.mrf.mxu0
  %v1619 = vadd.f32 0.0, %v1618
  %1620 = vmatmul.f32.gmra.mxu0 %v1578
  %v1621 = vpop.f32.mrf.mxu0
  %v1622 = vadd.f32 0.0, %v1621
  %1623 = vdwg.mxu0
  %v1624 = vsub.f32 %v146, %v1601
  %v1625 = vsub.f32 %v149, %v1604
  %v1626 = vsub.f32 %v152, %v1607
  %v1627 = vsub.f32 %v155, %v1610
  %v1628 = vsub.f32 %v158, %v1613
  %v1629 = vsub.f32 %v161, %v1616
  %v1630 = vsub.f32 %v164, %v1619
  %v1631 = vsub.f32 %v167, %v1622
  %1633 = vset.pattern.permute.xlu0 0
  %1634 = vperm.xlu0 %1633, %v118
  %v1635 = vpop.permute.xlu0 %1634
  %1638 = vset.pattern.permute.xlu0 0
  %1639 = vperm.xlu0 %1638, %v119
  %v1640 = vpop.permute.xlu0 %1639
  %v1642 = vadd.f32 %v1624, %v1635
  %v1643 = vadd.f32 %v1625, %v1640
  %v1644 = vadd.f32 %v1626, %v1635
  %v1645 = vadd.f32 %v1627, %v1640
  %v1646 = vadd.f32 %v1628, %v1635
  %v1647 = vadd.f32 %v1629, %v1640
  %v1648 = vadd.f32 %v1630, %v1635
  %v1649 = vadd.f32 %v1631, %v1640
  %vm1650 = vcmask 64512
  %v1651 = vsel %vm1650, %v1642, -inf
  %v1652 = vsel %vm1650, %v1643, -inf
  %v1653 = vmax.f32 %v1651, %v1652
  %v1654 = vrot.slane %v1653, 4
  %v1655 = vmax.f32 %v1653, %v1654
  %v1656 = vrot.slane %v1655, 2
  %v1657 = vmax.f32 %v1655, %v1656
  %v1658 = vrot.slane %v1657, 1
  %v1659 = vmax.f32 %v1657, %v1658
  %v1660 = vsel %vm1650, %v1644, -inf
  %v1661 = vsel %vm1650, %v1645, -inf
  %v1662 = vmax.f32 %v1660, %v1661
  %v1663 = vrot.slane %v1662, 4
  %v1664 = vmax.f32 %v1662, %v1663
  %v1665 = vrot.slane %v1664, 2
  %v1666 = vmax.f32 %v1664, %v1665
  %v1667 = vrot.slane %v1666, 1
  %v1668 = vmax.f32 %v1666, %v1667
  %v1669 = vsel %vm1650, %v1646, -inf
  %v1670 = vsel %vm1650, %v1647, -inf
  %v1671 = vmax.f32 %v1669, %v1670
  %v1672 = vrot.slane %v1671, 4
  %v1673 = vmax.f32 %v1671, %v1672
  %v1674 = vrot.slane %v1673, 2
  %v1675 = vmax.f32 %v1673, %v1674
  %v1676 = vrot.slane %v1675, 1
  %v1677 = vmax.f32 %v1675, %v1676
  %v1678 = vsel %vm1650, %v1648, -inf
  %v1679 = vsel %vm1650, %v1649, -inf
  %v1680 = vmax.f32 %v1678, %v1679
  %v1681 = vrot.slane %v1680, 4
  %v1682 = vmax.f32 %v1680, %v1681
  %v1683 = vrot.slane %v1682, 2
  %v1684 = vmax.f32 %v1682, %v1683
  %v1685 = vrot.slane %v1684, 1
  %v1686 = vmax.f32 %v1684, %v1685
  %v1687 = vsub.f32 %v1642, %v1659
  %v1688 = vsub.f32 %v1643, %v1659
  %v1689 = vsub.f32 %v1644, %v1668
  %v1690 = vsub.f32 %v1645, %v1668
  %v1691 = vsub.f32 %v1646, %v1677
  %v1692 = vsub.f32 %v1647, %v1677
  %v1693 = vsub.f32 %v1648, %v1686
  %v1694 = vsub.f32 %v1649, %v1686
  %v1695 = vmul.f32 %v1687, 1.442695
  %v1696 = vpow.pop %v1695
  %v1697 = vmul.f32 %v1688, 1.442695
  %v1698 = vpow.pop %v1697
  %v1699 = vmul.f32 %v1689, 1.442695
  %v1700 = vpow.pop %v1699
  %v1701 = vmul.f32 %v1690, 1.442695
  %v1702 = vpow.pop %v1701
  %v1703 = vmul.f32 %v1691, 1.442695
  %v1704 = vpow.pop %v1703
  %v1705 = vmul.f32 %v1692, 1.442695
  %v1706 = vpow.pop %v1705
  %v1707 = vmul.f32 %v1693, 1.442695
  %v1708 = vpow.pop %v1707
  %v1709 = vmul.f32 %v1694, 1.442695
  %v1710 = vpow.pop %v1709
  %v1711 = vsel %vm1650, %v1696, 0.0
  %v1712 = vsel %vm1650, %v1698, 0.0
  %v1713 = vadd.f32 %v1711, %v1712
  %v1714 = vrot.slane %v1713, 4
  %v1715 = vadd.f32 %v1713, %v1714
  %v1716 = vrot.slane %v1715, 2
  %v1717 = vadd.f32 %v1715, %v1716
  %v1718 = vrot.slane %v1717, 1
  %v1719 = vadd.f32 %v1717, %v1718
  %v1720 = vsel %vm1650, %v1700, 0.0
  %v1721 = vsel %vm1650, %v1702, 0.0
  %v1722 = vadd.f32 %v1720, %v1721
  %v1723 = vrot.slane %v1722, 4
  %v1724 = vadd.f32 %v1722, %v1723
  %v1725 = vrot.slane %v1724, 2
  %v1726 = vadd.f32 %v1724, %v1725
  %v1727 = vrot.slane %v1726, 1
  %v1728 = vadd.f32 %v1726, %v1727
  %v1729 = vsel %vm1650, %v1704, 0.0
  %v1730 = vsel %vm1650, %v1706, 0.0
  %v1731 = vadd.f32 %v1729, %v1730
  %v1732 = vrot.slane %v1731, 4
  %v1733 = vadd.f32 %v1731, %v1732
  %v1734 = vrot.slane %v1733, 2
  %v1735 = vadd.f32 %v1733, %v1734
  %v1736 = vrot.slane %v1735, 1
  %v1737 = vadd.f32 %v1735, %v1736
  %v1738 = vsel %vm1650, %v1708, 0.0
  %v1739 = vsel %vm1650, %v1710, 0.0
  %v1740 = vadd.f32 %v1738, %v1739
  %v1741 = vrot.slane %v1740, 4
  %v1742 = vadd.f32 %v1740, %v1741
  %v1743 = vrot.slane %v1742, 2
  %v1744 = vadd.f32 %v1742, %v1743
  %v1745 = vrot.slane %v1744, 1
  %v1746 = vadd.f32 %v1744, %v1745
  %v1747 = vlog2.pop %v1719
  %v1748 = vmul.f32 %v1747, 0.6931472
  %v1749 = vlog2.pop %v1728
  %v1750 = vmul.f32 %v1749, 0.6931472
  %v1751 = vlog2.pop %v1737
  %v1752 = vmul.f32 %v1751, 0.6931472
  %v1753 = vlog2.pop %v1746
  %v1754 = vmul.f32 %v1753, 0.6931472
  %v1755 = vadd.f32 %v1748, %v1659
  %v1756 = vadd.f32 %v1750, %v1668
  %v1757 = vadd.f32 %v1752, %v1677
  %v1758 = vadd.f32 %v1754, %v1686
  %v1759 = vsub.f32 %v1642, %v1755
  %v1760 = vsub.f32 %v1643, %v1755
  %v1761 = vsub.f32 %v1644, %v1756
  %v1762 = vsub.f32 %v1645, %v1756
  %v1763 = vsub.f32 %v1646, %v1757
  %v1764 = vsub.f32 %v1647, %v1757
  %v1765 = vsub.f32 %v1648, %v1758
  %v1766 = vsub.f32 %v1649, %v1758
  %1767 = vst.msk [vmem:[%s7] sm:$0xff] %vm1650, %v1759
  %1768 = vst.msk [vmem:[%s7 + $0x8] sm:$0xff] %vm1650, %v1760
  %1769 = vst.msk [vmem:[%s7 + $0x10] sm:$0xff] %vm1650, %v1761
  %1770 = vst.msk [vmem:[%s7 + $0x18] sm:$0xff] %vm1650, %v1762
  %1771 = vst.msk [vmem:[%s7 + $0x20] sm:$0xff] %vm1650, %v1763
  %1772 = vst.msk [vmem:[%s7 + $0x28] sm:$0xff] %vm1650, %v1764
  %1773 = vst.msk [vmem:[%s7 + $0x30] sm:$0xff] %vm1650, %v1765
  %1774 = vst.msk [vmem:[%s7 + $0x38] sm:$0xff] %vm1650, %v1766
  // Predicated region
  $region30: #{fused_log_posterior.1} parent=0 // pred_check
    _
  $region31: #{fused_log_posterior.1} parent=0 // pred_check_branch
    %1776 = sbr.rel (0) target = $region33
  $region32: #{fused_log_posterior.1} parent=0 // pred_region
    _
  $region33: #{fused_log_posterior.1} parent=0 // pred_fallthru
    _
  // Predicated region
  $region34: #{fused_log_posterior.1} parent=0 // pred_check
    _
  $region35: #{fused_log_posterior.1} parent=0 // pred_check_branch
    %1778 = sbr.rel (0) target = $region37
  $region36: #{fused_log_posterior.1} parent=0 // pred_region
    _
  $region37: #{fused_log_posterior.1} parent=0 // pred_fallthru
    _

</llo_original>
